<compile_context>
chip_gen: v5e
topology: v5e:2x2
jax: 0.10.0
libtpu: 0.0.40
codegen_flags: <defaults>
</compile_context>

<pallas_src>
import numpy as np
import jax
import jax.numpy as jnp
from jax.experimental import pallas as pl
from jax.experimental.pallas import tpu as pltpu


# --------------------------- resize helper (host) ----------------------------

def bilinear_matrix(out_size, in_size):
    """1-D interpolation matrix matching F.interpolate(mode='bilinear',
    align_corners=False).  `antialias=True` only changes behaviour when
    DOWN-sampling; every resize in this decoder is an upsample to the
    highest-resolution stage, so plain bilinear weights are exact."""
    # TODO(synk): the repo's `resize` does not pin `mode`; bilinear assumed.
    scale = in_size / out_size
    o = np.arange(out_size, dtype=np.float64)
    src = np.clip((o + 0.5) * scale - 0.5, 0.0, in_size - 1)
    i0 = np.floor(src).astype(np.int64)
    i1 = np.minimum(i0 + 1, in_size - 1)
    w1 = (src - i0).astype(np.float32)
    w0 = (1.0 - w1).astype(np.float32)
    R = np.zeros((out_size, in_size), dtype=np.float32)
    R[np.arange(out_size), i0] += w0
    R[np.arange(out_size), i1] += w1
    return R


# ------------------------------ fused kernel ---------------------------------

def make_decoder_kernel(has_resize, bb):
    """has_resize: static tuple of bools per stage.  bb: batch elems/step."""
    S = len(has_resize)

    def kernel(*refs):
        out_ref = refs[-1]
        bias_ref = refs[-2]

        # Parse per-stage refs: [x_s, Wp_s, A_s, (R_s if resized)].
        stages = []
        pos = 0
        for s in range(S):
            if has_resize[s]:
                stages.append(refs[pos:pos + 4])
                pos += 4
            else:
                stages.append(refs[pos:pos + 3] + (None,))
                pos += 3

        bias = bias_ref[...]                                  # (C, 1) f32

        for bi in range(bb):
            logits = None                                     # (C, N0) f32 acc
            for s in range(S):
                x_ref, wp_ref, a_ref, r_ref = stages[s]
                # projection (bias folded out): (N_s, d_s) @ (d_s, E)
                proj = jnp.dot(x_ref[bi], wp_ref[...],
                               preferred_element_type=jnp.float32)
                if r_ref is not None:
                    # bilinear resize via kron'd matrix: (N0, N_s) @ (N_s, E)
                    feat = jnp.dot(r_ref[...], proj.astype(r_ref.dtype),
                                   preferred_element_type=jnp.float32)
                else:
                    feat = proj                               # identity resize
                # folded fuse-slice + classifier, channel-major:
                # (C, E) . (N0, E)^T -> (C, N0)
                contrib = jax.lax.dot_general(
                    a_ref[...], feat.astype(a_ref.dtype),
                    dimension_numbers=(((1,), (1,)), ((), ())),
                    preferred_element_type=jnp.float32)
                logits = contrib if logits is None else logits + contrib
            out_ref[bi] = (logits + bias).astype(out_ref.dtype)

    return kernel


# ------------------------- parameter prep (one-time) -------------------------

def prepare_decoder(params, stage_hw, target_hw, compute_dtype=jnp.bfloat16):
    """Host-side folding: kron'd bilinear matrices, per-stage fused
    classifier weights A_s = (Wf_s @ Wc)^T, and a single combined bias."""
    tH, tW = target_hw
    E = params["proj_w"][0].shape[1]
    C = params["cls_w"].shape[1]

    fuse_w = np.asarray(params["fuse_w"], np.float32)      # (S*E, E)
    fuse_b = np.asarray(params["fuse_b"], np.float32)      # (E,)
    cls_w = np.asarray(params["cls_w"], np.float32)        # (E, C)
    cls_b = np.asarray(params["cls_b"], np.float32)        # (C,)

    proj_w, A, R, has_resize = [], [], [], []
    fused_bias_e = fuse_b.copy()
    for s, (H, W) in enumerate(stage_hw):
        wf_s = fuse_w[s * E:(s + 1) * E, :]                 # (E, E)
        proj_w.append(jnp.asarray(
            np.asarray(params["proj_w"][s], np.float32), compute_dtype))
        A.append(jnp.asarray((wf_s @ cls_w).T, compute_dtype))   # (C, E)
        bp_s = np.asarray(params["proj_b"][s], np.float32)
        fused_bias_e = fused_bias_e + bp_s @ wf_s           # bias passes resize
        if (H, W) == (tH, tW):
            R.append(None)
            has_resize.append(False)                         # identity: skip
        else:
            Rk = np.kron(bilinear_matrix(tH, H), bilinear_matrix(tW, W))
            R.append(jnp.asarray(Rk, compute_dtype))
            has_resize.append(True)
    b_total = fused_bias_e @ cls_w + cls_b                  # (C,)

    return dict(
        proj_w=proj_w, A=A, R=R, has_resize=tuple(has_resize),
        b_total=jnp.asarray(b_total.reshape(C, 1), jnp.float32),
        target_hw=(tH, tW), embed_dim=E, num_classes=C,
        compute_dtype=compute_dtype,
    )


# ------------------------------ chip heuristic --------------------------------

def _cores_per_chip():
    """2 TensorCores per chip on v7x-class devices, otherwise treat as 1."""
    try:
        kind = jax.devices()[0].device_kind.lower()
    except Exception:
        return 1
    return 2 if ("v7" in kind or "7x" in kind) else 1


# ------------------------------ decoder forward ------------------------------

def mlp_decoder_forward(xs, prep, *, batch_grid=None):
    """xs: list of (x, H, W) with x of shape (B, H*W, d_i).  Returns
    (B, num_classes, tH, tW); target size taken from the first stage."""
    tH, tW = prep["target_hw"]
    N0 = tH * tW
    E = prep["embed_dim"]
    C = prep["num_classes"]
    B = xs[0][0].shape[0]
    cdt = prep["compute_dtype"]

    if batch_grid is None:
        batch_grid = _cores_per_chip() > 1
    # single grid step (batch loop inside kernel) on 1-TC chips; grid=(B,) on v7x
    bb = 1 if (batch_grid and B > 1) else B
    grid = (B // bb,)

    inputs, in_specs = [], []
    flops = 0
    for s, (x, H, W) in enumerate(xs):
        N, d = x.shape[1], x.shape[2]
        assert N == H * W
        inputs += [x.astype(cdt), prep["proj_w"][s], prep["A"][s]]
        in_specs += [
            pl.BlockSpec((bb, N, d), lambda b: (b, 0, 0)),
            pl.BlockSpec((d, E), lambda b: (0, 0)),
            pl.BlockSpec((C, E), lambda b: (0, 0)),
        ]
        flops += 2 * B * (N * d * E + C * N0 * E)
        if prep["has_resize"][s]:
            inputs.append(prep["R"][s])
            in_specs.append(pl.BlockSpec((N0, N), lambda b: (0, 0)))
            flops += 2 * B * N0 * N * E
    inputs.append(prep["b_total"])
    in_specs.append(pl.BlockSpec((C, 1), lambda b: (0, 0)))

    bytes_accessed = (sum(int(np.prod(a.shape)) * a.dtype.itemsize for a in inputs)
                      + B * C * N0 * 4)

    out = pl.pallas_call(
        make_decoder_kernel(prep["has_resize"], bb),
        grid=grid,
        in_specs=in_specs,
        out_specs=pl.BlockSpec((bb, C, N0), lambda b: (b, 0, 0)),
        out_shape=jax.ShapeDtypeStruct((B, C, N0), jnp.float32),
        compiler_params=pltpu.CompilerParams(
            dimension_semantics=("parallel",)),
        cost_estimate=pl.CostEstimate(
            flops=flops, transcendentals=0, bytes_accessed=bytes_accessed),
    )(*inputs)

    # (B, C, N0) -> (B, C, tH, tW): contiguous reshape, no data movement.
    return out.reshape(B, C, tH, tW)


# ------------------------- pure-JAX reference (check) ------------------------

def reference_forward(xs, params):
    hp = jax.lax.Precision.HIGHEST
    tH, tW = xs[0][1], xs[0][2]
    B = xs[0][0].shape[0]
    E = params["proj_w"][0].shape[1]
    feats = []
    for (x, H, W), wp, bp in zip(xs, params["proj_w"], params["proj_b"]):
        xp = jnp.einsum("bnd,de->bne", x, wp, precision=hp) + bp
        xp = xp.transpose(0, 2, 1).reshape(B, E, H, W)
        Rh = jnp.asarray(bilinear_matrix(tH, H))
        Rw = jnp.asarray(bilinear_matrix(tW, W))
        xp = jnp.einsum("oh,behw,pw->beop", Rh, xp, Rw, precision=hp)
        xp = xp.reshape(B, E, tH * tW).transpose(0, 2, 1)
        feats.append(xp)
    x = jnp.concatenate(feats, axis=2)
    x = jnp.einsum("bnk,ke->bne", x, params["fuse_w"], precision=hp) + params["fuse_b"]
    x = jnp.einsum("bne,ec->bnc", x, params["cls_w"], precision=hp) + params["cls_b"]
    return x.transpose(0, 2, 1).reshape(B, -1, tH, tW)


# ------------------------------------ main -----------------------------------

if __name__ == "__main__":
    key = jax.random.PRNGKey(0)

    B = 2
    embed_dim = 32
    num_classes = 12
    dims = [8, 16, 32, 64]
    hws = [(16, 16), (8, 8), (4, 4), (2, 2)]

    keys = iter(jax.random.split(key, 64))

    def init_linear(fan_in, fan_out):
        w = jax.random.normal(next(keys), (fan_in, fan_out), jnp.float32)
        w = w * (1.0 / np.sqrt(fan_in))
        b = 0.01 * jax.random.normal(next(keys), (fan_out,), jnp.float32)
        return w, b

    proj_w, proj_b = [], []
    for d in dims:
        w, b = init_linear(d, embed_dim)
        proj_w.append(w)
        proj_b.append(b)
    fuse_w, fuse_b = init_linear(embed_dim * 4, embed_dim)
    cls_w, cls_b = init_linear(embed_dim, num_classes)

    params = dict(proj_w=proj_w, proj_b=proj_b,
                  fuse_w=fuse_w, fuse_b=fuse_b,
                  cls_w=cls_w, cls_b=cls_b)

    xs = []
    for d, (H, W) in zip(dims, hws):
        x = jax.random.normal(next(keys), (B, H * W, d), jnp.float32)
        xs.append((x, H, W))

    prep = prepare_decoder(params, hws, hws[0])

    out = mlp_decoder_forward(xs, prep)
    out = jax.block_until_ready(out)

    assert out.shape == (B, num_classes, hws[0][0], hws[0][1]), out.shape

    ref = jax.block_until_ready(reference_forward(xs, params))
    # bf16 matmul operands (f32 accumulation) -> standard bf16 tolerances.
    np.testing.assert_allclose(np.asarray(out), np.asarray(ref),
                               rtol=2e-2, atol=2e-2)

    print("KERNEL_OK")
</pallas_src>

<mosaic_0001>
module attributes {stable_mosaic.version = 11 : i64} {
  func.func @kernel(%arg0: i32, %arg1: memref<2x256x8xbf16, #tpu.memory_space<vmem>>, %arg2: memref<8x32xbf16, #tpu.memory_space<vmem>>, %arg3: memref<12x32xbf16, #tpu.memory_space<vmem>>, %arg4: memref<2x64x16xbf16, #tpu.memory_space<vmem>>, %arg5: memref<16x32xbf16, #tpu.memory_space<vmem>>, %arg6: memref<12x32xbf16, #tpu.memory_space<vmem>>, %arg7: memref<256x64xbf16, #tpu.memory_space<vmem>>, %arg8: memref<2x16x32xbf16, #tpu.memory_space<vmem>>, %arg9: memref<32x32xbf16, #tpu.memory_space<vmem>>, %arg10: memref<12x32xbf16, #tpu.memory_space<vmem>>, %arg11: memref<256x16xbf16, #tpu.memory_space<vmem>>, %arg12: memref<2x4x64xbf16, #tpu.memory_space<vmem>>, %arg13: memref<64x32xbf16, #tpu.memory_space<vmem>>, %arg14: memref<12x32xbf16, #tpu.memory_space<vmem>>, %arg15: memref<256x4xbf16, #tpu.memory_space<vmem>>, %arg16: memref<12x1xf32, #tpu.memory_space<vmem>>, %arg17: memref<2x12x256xf32, #tpu.memory_space<vmem>>) attributes {dimension_semantics = [#tpu.dimension_semantics<parallel>], iteration_bounds = array<i64: 1>, scalar_prefetch = 0 : i64, scratch_operands = 0 : i64, tpu.core_type = #tpu.core_type<tc>, window_params = [{transform_indices = @transform_0, window_bounds = array<i64: 2, 256, 8>}, {pipeline_mode = #tpu.pipeline_mode<synchronous>, transform_indices = @transform_1, window_bounds = array<i64: 8, 32>}, {pipeline_mode = #tpu.pipeline_mode<synchronous>, transform_indices = @transform_2, window_bounds = array<i64: 12, 32>}, {transform_indices = @transform_3, window_bounds = array<i64: 2, 64, 16>}, {pipeline_mode = #tpu.pipeline_mode<synchronous>, transform_indices = @transform_4, window_bounds = array<i64: 16, 32>}, {pipeline_mode = #tpu.pipeline_mode<synchronous>, transform_indices = @transform_5, window_bounds = array<i64: 12, 32>}, {pipeline_mode = #tpu.pipeline_mode<synchronous>, transform_indices = @transform_6, window_bounds = array<i64: 256, 64>}, {transform_indices = @transform_7, window_bounds = array<i64: 2, 16, 32>}, {pipeline_mode = #tpu.pipeline_mode<synchronous>, transform_indices = @transform_8, window_bounds = array<i64: 32, 32>}, {pipeline_mode = #tpu.pipeline_mode<synchronous>, transform_indices = @transform_9, window_bounds = array<i64: 12, 32>}, {pipeline_mode = #tpu.pipeline_mode<synchronous>, transform_indices = @transform_10, window_bounds = array<i64: 256, 16>}, {transform_indices = @transform_11, window_bounds = array<i64: 2, 4, 64>}, {pipeline_mode = #tpu.pipeline_mode<synchronous>, transform_indices = @transform_12, window_bounds = array<i64: 64, 32>}, {pipeline_mode = #tpu.pipeline_mode<synchronous>, transform_indices = @transform_13, window_bounds = array<i64: 12, 32>}, {pipeline_mode = #tpu.pipeline_mode<synchronous>, transform_indices = @transform_14, window_bounds = array<i64: 256, 4>}, {pipeline_mode = #tpu.pipeline_mode<synchronous>, transform_indices = @transform_15, window_bounds = array<i64: 12, 1>}, {transform_indices = @transform_16, window_bounds = array<i64: 2, 12, 256>}]} {
    %c0 = arith.constant 0 : index
    %c0_0 = arith.constant 0 : index
    %0 = vector.load %arg16[%c0, %c0_0] : memref<12x1xf32, #tpu.memory_space<vmem>>, vector<12x1xf32>
    %c0_1 = arith.constant 0 : index
    %c0_2 = arith.constant 0 : index
    %c0_3 = arith.constant 0 : index
    %1 = vector.load %arg1[%c0_1, %c0_2, %c0_3] : memref<2x256x8xbf16, #tpu.memory_space<vmem>>, vector<1x256x8xbf16>
    %2 = vector.shape_cast %1 : vector<1x256x8xbf16> to vector<256x8xbf16>
    %c0_4 = arith.constant 0 : index
    %c0_5 = arith.constant 0 : index
    %3 = vector.load %arg2[%c0_4, %c0_5] : memref<8x32xbf16, #tpu.memory_space<vmem>>, vector<8x32xbf16>
    %cst = arith.constant dense<0.000000e+00> : vector<256x32xf32>
    %4 = tpu.matmul %2, %3, %cst {dimension_numbers = #tpu.dot_dimension_numbers<[1], [0], [0], [1], [0, 0, 1, 1], [], []>} : vector<256x8xbf16>, vector<8x32xbf16>, vector<256x32xf32> -> vector<256x32xf32>
    %c0_6 = arith.constant 0 : index
    %c0_7 = arith.constant 0 : index
    %5 = vector.load %arg3[%c0_6, %c0_7] : memref<12x32xbf16, #tpu.memory_space<vmem>>, vector<12x32xbf16>
    %6 = arith.truncf %4 : vector<256x32xf32> to vector<256x32xbf16>
    %cst_8 = arith.constant dense<0.000000e+00> : vector<12x256xf32>
    %7 = tpu.matmul %5, %6, %cst_8 {dimension_numbers = #tpu.dot_dimension_numbers<[1], [1], [0], [0], [0, 0, 1, 0], [], []>} : vector<12x32xbf16>, vector<256x32xbf16>, vector<12x256xf32> -> vector<12x256xf32>
    %c0_9 = arith.constant 0 : index
    %c0_10 = arith.constant 0 : index
    %c0_11 = arith.constant 0 : index
    %8 = vector.load %arg4[%c0_9, %c0_10, %c0_11] : memref<2x64x16xbf16, #tpu.memory_space<vmem>>, vector<1x64x16xbf16>
    %9 = vector.shape_cast %8 : vector<1x64x16xbf16> to vector<64x16xbf16>
    %c0_12 = arith.constant 0 : index
    %c0_13 = arith.constant 0 : index
    %10 = vector.load %arg5[%c0_12, %c0_13] : memref<16x32xbf16, #tpu.memory_space<vmem>>, vector<16x32xbf16>
    %cst_14 = arith.constant dense<0.000000e+00> : vector<64x32xf32>
    %11 = tpu.matmul %9, %10, %cst_14 {dimension_numbers = #tpu.dot_dimension_numbers<[1], [0], [0], [1], [0, 0, 1, 1], [], []>} : vector<64x16xbf16>, vector<16x32xbf16>, vector<64x32xf32> -> vector<64x32xf32>
    %c0_15 = arith.constant 0 : index
    %c0_16 = arith.constant 0 : index
    %12 = vector.load %arg7[%c0_15, %c0_16] : memref<256x64xbf16, #tpu.memory_space<vmem>>, vector<256x64xbf16>
    %13 = arith.truncf %11 : vector<64x32xf32> to vector<64x32xbf16>
    %cst_17 = arith.constant dense<0.000000e+00> : vector<256x32xf32>
    %14 = tpu.matmul %12, %13, %cst_17 {dimension_numbers = #tpu.dot_dimension_numbers<[1], [0], [0], [1], [0, 0, 1, 1], [], []>} : vector<256x64xbf16>, vector<64x32xbf16>, vector<256x32xf32> -> vector<256x32xf32>
    %c0_18 = arith.constant 0 : index
    %c0_19 = arith.constant 0 : index
    %15 = vector.load %arg6[%c0_18, %c0_19] : memref<12x32xbf16, #tpu.memory_space<vmem>>, vector<12x32xbf16>
    %16 = arith.truncf %14 : vector<256x32xf32> to vector<256x32xbf16>
    %cst_20 = arith.constant dense<0.000000e+00> : vector<12x256xf32>
    %17 = tpu.matmul %15, %16, %cst_20 {dimension_numbers = #tpu.dot_dimension_numbers<[1], [1], [0], [0], [0, 0, 1, 0], [], []>} : vector<12x32xbf16>, vector<256x32xbf16>, vector<12x256xf32> -> vector<12x256xf32>
    %18 = arith.addf %7, %17 : vector<12x256xf32>
    %c0_21 = arith.constant 0 : index
    %c0_22 = arith.constant 0 : index
    %c0_23 = arith.constant 0 : index
    %19 = vector.load %arg8[%c0_21, %c0_22, %c0_23] : memref<2x16x32xbf16, #tpu.memory_space<vmem>>, vector<1x16x32xbf16>
    %20 = vector.shape_cast %19 : vector<1x16x32xbf16> to vector<16x32xbf16>
    %c0_24 = arith.constant 0 : index
    %c0_25 = arith.constant 0 : index
    %21 = vector.load %arg9[%c0_24, %c0_25] : memref<32x32xbf16, #tpu.memory_space<vmem>>, vector<32x32xbf16>
    %cst_26 = arith.constant dense<0.000000e+00> : vector<16x32xf32>
    %22 = tpu.matmul %20, %21, %cst_26 {dimension_numbers = #tpu.dot_dimension_numbers<[1], [0], [0], [1], [0, 0, 1, 1], [], []>} : vector<16x32xbf16>, vector<32x32xbf16>, vector<16x32xf32> -> vector<16x32xf32>
    %c0_27 = arith.constant 0 : index
    %c0_28 = arith.constant 0 : index
    %23 = vector.load %arg11[%c0_27, %c0_28] : memref<256x16xbf16, #tpu.memory_space<vmem>>, vector<256x16xbf16>
    %24 = arith.truncf %22 : vector<16x32xf32> to vector<16x32xbf16>
    %cst_29 = arith.constant dense<0.000000e+00> : vector<256x32xf32>
    %25 = tpu.matmul %23, %24, %cst_29 {dimension_numbers = #tpu.dot_dimension_numbers<[1], [0], [0], [1], [0, 0, 1, 1], [], []>} : vector<256x16xbf16>, vector<16x32xbf16>, vector<256x32xf32> -> vector<256x32xf32>
    %c0_30 = arith.constant 0 : index
    %c0_31 = arith.constant 0 : index
    %26 = vector.load %arg10[%c0_30, %c0_31] : memref<12x32xbf16, #tpu.memory_space<vmem>>, vector<12x32xbf16>
    %27 = arith.truncf %25 : vector<256x32xf32> to vector<256x32xbf16>
    %cst_32 = arith.constant dense<0.000000e+00> : vector<12x256xf32>
    %28 = tpu.matmul %26, %27, %cst_32 {dimension_numbers = #tpu.dot_dimension_numbers<[1], [1], [0], [0], [0, 0, 1, 0], [], []>} : vector<12x32xbf16>, vector<256x32xbf16>, vector<12x256xf32> -> vector<12x256xf32>
    %29 = arith.addf %18, %28 : vector<12x256xf32>
    %c0_33 = arith.constant 0 : index
    %c0_34 = arith.constant 0 : index
    %c0_35 = arith.constant 0 : index
    %30 = vector.load %arg12[%c0_33, %c0_34, %c0_35] : memref<2x4x64xbf16, #tpu.memory_space<vmem>>, vector<1x4x64xbf16>
    %31 = vector.shape_cast %30 : vector<1x4x64xbf16> to vector<4x64xbf16>
    %c0_36 = arith.constant 0 : index
    %c0_37 = arith.constant 0 : index
    %32 = vector.load %arg13[%c0_36, %c0_37] : memref<64x32xbf16, #tpu.memory_space<vmem>>, vector<64x32xbf16>
    %cst_38 = arith.constant dense<0.000000e+00> : vector<4x32xf32>
    %33 = tpu.matmul %31, %32, %cst_38 {dimension_numbers = #tpu.dot_dimension_numbers<[1], [0], [0], [1], [0, 0, 1, 1], [], []>} : vector<4x64xbf16>, vector<64x32xbf16>, vector<4x32xf32> -> vector<4x32xf32>
    %c0_39 = arith.constant 0 : index
    %c0_40 = arith.constant 0 : index
    %34 = vector.load %arg15[%c0_39, %c0_40] : memref<256x4xbf16, #tpu.memory_space<vmem>>, vector<256x4xbf16>
    %35 = arith.truncf %33 : vector<4x32xf32> to vector<4x32xbf16>
    %cst_41 = arith.constant dense<0.000000e+00> : vector<256x32xf32>
    %36 = tpu.matmul %34, %35, %cst_41 {dimension_numbers = #tpu.dot_dimension_numbers<[1], [0], [0], [1], [0, 0, 1, 1], [], []>} : vector<256x4xbf16>, vector<4x32xbf16>, vector<256x32xf32> -> vector<256x32xf32>
    %c0_42 = arith.constant 0 : index
    %c0_43 = arith.constant 0 : index
    %37 = vector.load %arg14[%c0_42, %c0_43] : memref<12x32xbf16, #tpu.memory_space<vmem>>, vector<12x32xbf16>
    %38 = arith.truncf %36 : vector<256x32xf32> to vector<256x32xbf16>
    %cst_44 = arith.constant dense<0.000000e+00> : vector<12x256xf32>
    %39 = tpu.matmul %37, %38, %cst_44 {dimension_numbers = #tpu.dot_dimension_numbers<[1], [1], [0], [0], [0, 0, 1, 0], [], []>} : vector<12x32xbf16>, vector<256x32xbf16>, vector<12x256xf32> -> vector<12x256xf32>
    %40 = arith.addf %29, %39 : vector<12x256xf32>
    %41 = vector.broadcast %0 : vector<12x1xf32> to vector<12x256xf32>
    %42 = arith.addf %40, %41 : vector<12x256xf32>
    %c0_45 = arith.constant 0 : index
    %c0_46 = arith.constant 0 : index
    %c0_47 = arith.constant 0 : index
    %43 = vector.load %arg17[%c0_45, %c0_46, %c0_47] : memref<2x12x256xf32, #tpu.memory_space<vmem>>, vector<1x12x256xf32>
    %44 = vector.shape_cast %43 : vector<1x12x256xf32> to vector<12x256xf32>
    %45 = vector.shape_cast %42 : vector<12x256xf32> to vector<1x12x256xf32>
    tpu.vector_store %arg17[%c0_45, %c0_46, %c0_47], %45 {strides = array<i32>} : memref<2x12x256xf32, #tpu.memory_space<vmem>>, vector<1x12x256xf32>,
    %c1 = arith.constant 1 : index
    %c0_48 = arith.constant 0 : index
    %c0_49 = arith.constant 0 : index
    %46 = vector.load %arg1[%c1, %c0_48, %c0_49] : memref<2x256x8xbf16, #tpu.memory_space<vmem>>, vector<1x256x8xbf16>
    %47 = vector.shape_cast %46 : vector<1x256x8xbf16> to vector<256x8xbf16>
    %c0_50 = arith.constant 0 : index
    %c0_51 = arith.constant 0 : index
    %48 = vector.load %arg2[%c0_50, %c0_51] : memref<8x32xbf16, #tpu.memory_space<vmem>>, vector<8x32xbf16>
    %cst_52 = arith.constant dense<0.000000e+00> : vector<256x32xf32>
    %49 = tpu.matmul %47, %48, %cst_52 {dimension_numbers = #tpu.dot_dimension_numbers<[1], [0], [0], [1], [0, 0, 1, 1], [], []>} : vector<256x8xbf16>, vector<8x32xbf16>, vector<256x32xf32> -> vector<256x32xf32>
    %c0_53 = arith.constant 0 : index
    %c0_54 = arith.constant 0 : index
    %50 = vector.load %arg3[%c0_53, %c0_54] : memref<12x32xbf16, #tpu.memory_space<vmem>>, vector<12x32xbf16>
    %51 = arith.truncf %49 : vector<256x32xf32> to vector<256x32xbf16>
    %cst_55 = arith.constant dense<0.000000e+00> : vector<12x256xf32>
    %52 = tpu.matmul %50, %51, %cst_55 {dimension_numbers = #tpu.dot_dimension_numbers<[1], [1], [0], [0], [0, 0, 1, 0], [], []>} : vector<12x32xbf16>, vector<256x32xbf16>, vector<12x256xf32> -> vector<12x256xf32>
    %c1_56 = arith.constant 1 : index
    %c0_57 = arith.constant 0 : index
    %c0_58 = arith.constant 0 : index
    %53 = vector.load %arg4[%c1_56, %c0_57, %c0_58] : memref<2x64x16xbf16, #tpu.memory_space<vmem>>, vector<1x64x16xbf16>
    %54 = vector.shape_cast %53 : vector<1x64x16xbf16> to vector<64x16xbf16>
    %c0_59 = arith.constant 0 : index
    %c0_60 = arith.constant 0 : index
    %55 = vector.load %arg5[%c0_59, %c0_60] : memref<16x32xbf16, #tpu.memory_space<vmem>>, vector<16x32xbf16>
    %cst_61 = arith.constant dense<0.000000e+00> : vector<64x32xf32>
    %56 = tpu.matmul %54, %55, %cst_61 {dimension_numbers = #tpu.dot_dimension_numbers<[1], [0], [0], [1], [0, 0, 1, 1], [], []>} : vector<64x16xbf16>, vector<16x32xbf16>, vector<64x32xf32> -> vector<64x32xf32>
    %c0_62 = arith.constant 0 : index
    %c0_63 = arith.constant 0 : index
    %57 = vector.load %arg7[%c0_62, %c0_63] : memref<256x64xbf16, #tpu.memory_space<vmem>>, vector<256x64xbf16>
    %58 = arith.truncf %56 : vector<64x32xf32> to vector<64x32xbf16>
    %cst_64 = arith.constant dense<0.000000e+00> : vector<256x32xf32>
    %59 = tpu.matmul %57, %58, %cst_64 {dimension_numbers = #tpu.dot_dimension_numbers<[1], [0], [0], [1], [0, 0, 1, 1], [], []>} : vector<256x64xbf16>, vector<64x32xbf16>, vector<256x32xf32> -> vector<256x32xf32>
    %c0_65 = arith.constant 0 : index
    %c0_66 = arith.constant 0 : index
    %60 = vector.load %arg6[%c0_65, %c0_66] : memref<12x32xbf16, #tpu.memory_space<vmem>>, vector<12x32xbf16>
    %61 = arith.truncf %59 : vector<256x32xf32> to vector<256x32xbf16>
    %cst_67 = arith.constant dense<0.000000e+00> : vector<12x256xf32>
    %62 = tpu.matmul %60, %61, %cst_67 {dimension_numbers = #tpu.dot_dimension_numbers<[1], [1], [0], [0], [0, 0, 1, 0], [], []>} : vector<12x32xbf16>, vector<256x32xbf16>, vector<12x256xf32> -> vector<12x256xf32>
    %63 = arith.addf %52, %62 : vector<12x256xf32>
    %c1_68 = arith.constant 1 : index
    %c0_69 = arith.constant 0 : index
    %c0_70 = arith.constant 0 : index
    %64 = vector.load %arg8[%c1_68, %c0_69, %c0_70] : memref<2x16x32xbf16, #tpu.memory_space<vmem>>, vector<1x16x32xbf16>
    %65 = vector.shape_cast %64 : vector<1x16x32xbf16> to vector<16x32xbf16>
    %c0_71 = arith.constant 0 : index
    %c0_72 = arith.constant 0 : index
    %66 = vector.load %arg9[%c0_71, %c0_72] : memref<32x32xbf16, #tpu.memory_space<vmem>>, vector<32x32xbf16>
    %cst_73 = arith.constant dense<0.000000e+00> : vector<16x32xf32>
    %67 = tpu.matmul %65, %66, %cst_73 {dimension_numbers = #tpu.dot_dimension_numbers<[1], [0], [0], [1], [0, 0, 1, 1], [], []>} : vector<16x32xbf16>, vector<32x32xbf16>, vector<16x32xf32> -> vector<16x32xf32>
    %c0_74 = arith.constant 0 : index
    %c0_75 = arith.constant 0 : index
    %68 = vector.load %arg11[%c0_74, %c0_75] : memref<256x16xbf16, #tpu.memory_space<vmem>>, vector<256x16xbf16>
    %69 = arith.truncf %67 : vector<16x32xf32> to vector<16x32xbf16>
    %cst_76 = arith.constant dense<0.000000e+00> : vector<256x32xf32>
    %70 = tpu.matmul %68, %69, %cst_76 {dimension_numbers = #tpu.dot_dimension_numbers<[1], [0], [0], [1], [0, 0, 1, 1], [], []>} : vector<256x16xbf16>, vector<16x32xbf16>, vector<256x32xf32> -> vector<256x32xf32>
    %c0_77 = arith.constant 0 : index
    %c0_78 = arith.constant 0 : index
    %71 = vector.load %arg10[%c0_77, %c0_78] : memref<12x32xbf16, #tpu.memory_space<vmem>>, vector<12x32xbf16>
    %72 = arith.truncf %70 : vector<256x32xf32> to vector<256x32xbf16>
    %cst_79 = arith.constant dense<0.000000e+00> : vector<12x256xf32>
    %73 = tpu.matmul %71, %72, %cst_79 {dimension_numbers = #tpu.dot_dimension_numbers<[1], [1], [0], [0], [0, 0, 1, 0], [], []>} : vector<12x32xbf16>, vector<256x32xbf16>, vector<12x256xf32> -> vector<12x256xf32>
    %74 = arith.addf %63, %73 : vector<12x256xf32>
    %c1_80 = arith.constant 1 : index
    %c0_81 = arith.constant 0 : index
    %c0_82 = arith.constant 0 : index
    %75 = vector.load %arg12[%c1_80, %c0_81, %c0_82] : memref<2x4x64xbf16, #tpu.memory_space<vmem>>, vector<1x4x64xbf16>
    %76 = vector.shape_cast %75 : vector<1x4x64xbf16> to vector<4x64xbf16>
    %c0_83 = arith.constant 0 : index
    %c0_84 = arith.constant 0 : index
    %77 = vector.load %arg13[%c0_83, %c0_84] : memref<64x32xbf16, #tpu.memory_space<vmem>>, vector<64x32xbf16>
    %cst_85 = arith.constant dense<0.000000e+00> : vector<4x32xf32>
    %78 = tpu.matmul %76, %77, %cst_85 {dimension_numbers = #tpu.dot_dimension_numbers<[1], [0], [0], [1], [0, 0, 1, 1], [], []>} : vector<4x64xbf16>, vector<64x32xbf16>, vector<4x32xf32> -> vector<4x32xf32>
    %c0_86 = arith.constant 0 : index
    %c0_87 = arith.constant 0 : index
    %79 = vector.load %arg15[%c0_86, %c0_87] : memref<256x4xbf16, #tpu.memory_space<vmem>>, vector<256x4xbf16>
    %80 = arith.truncf %78 : vector<4x32xf32> to vector<4x32xbf16>
    %cst_88 = arith.constant dense<0.000000e+00> : vector<256x32xf32>
    %81 = tpu.matmul %79, %80, %cst_88 {dimension_numbers = #tpu.dot_dimension_numbers<[1], [0], [0], [1], [0, 0, 1, 1], [], []>} : vector<256x4xbf16>, vector<4x32xbf16>, vector<256x32xf32> -> vector<256x32xf32>
    %c0_89 = arith.constant 0 : index
    %c0_90 = arith.constant 0 : index
    %82 = vector.load %arg14[%c0_89, %c0_90] : memref<12x32xbf16, #tpu.memory_space<vmem>>, vector<12x32xbf16>
    %83 = arith.truncf %81 : vector<256x32xf32> to vector<256x32xbf16>
    %cst_91 = arith.constant dense<0.000000e+00> : vector<12x256xf32>
    %84 = tpu.matmul %82, %83, %cst_91 {dimension_numbers = #tpu.dot_dimension_numbers<[1], [1], [0], [0], [0, 0, 1, 0], [], []>} : vector<12x32xbf16>, vector<256x32xbf16>, vector<12x256xf32> -> vector<12x256xf32>
    %85 = arith.addf %74, %84 : vector<12x256xf32>
    %86 = vector.broadcast %0 : vector<12x1xf32> to vector<12x256xf32>
    %87 = arith.addf %85, %86 : vector<12x256xf32>
    %c1_92 = arith.constant 1 : index
    %c0_93 = arith.constant 0 : index
    %c0_94 = arith.constant 0 : index
    %88 = vector.load %arg17[%c1_92, %c0_93, %c0_94] : memref<2x12x256xf32, #tpu.memory_space<vmem>>, vector<1x12x256xf32>
    %89 = vector.shape_cast %88 : vector<1x12x256xf32> to vector<12x256xf32>
    %90 = vector.shape_cast %87 : vector<12x256xf32> to vector<1x12x256xf32>
    tpu.vector_store %arg17[%c1_92, %c0_93, %c0_94], %90 {strides = array<i32>} : memref<2x12x256xf32, #tpu.memory_space<vmem>>, vector<1x12x256xf32>,
    return
  }
  func.func @transform_0(%arg0: i32) -> (i32, i32, i32) {
    %c0_i32 = arith.constant 0 : i32
    %c0_i32_0 = arith.constant 0 : i32
    %c0_i32_1 = arith.constant 0 : i32
    return %arg0, %c0_i32, %c0_i32_0 : i32, i32, i32
  }
  func.func @transform_1(%arg0: i32) -> (i32, i32) {
    %c0_i32 = arith.constant 0 : i32
    %c0_i32_0 = arith.constant 0 : i32
    %c0_i32_1 = arith.constant 0 : i32
    return %c0_i32, %c0_i32_0 : i32, i32
  }
  func.func @transform_2(%arg0: i32) -> (i32, i32) {
    %c0_i32 = arith.constant 0 : i32
    %c0_i32_0 = arith.constant 0 : i32
    %c0_i32_1 = arith.constant 0 : i32
    return %c0_i32, %c0_i32_0 : i32, i32
  }
  func.func @transform_3(%arg0: i32) -> (i32, i32, i32) {
    %c0_i32 = arith.constant 0 : i32
    %c0_i32_0 = arith.constant 0 : i32
    %c0_i32_1 = arith.constant 0 : i32
    return %arg0, %c0_i32, %c0_i32_0 : i32, i32, i32
  }
  func.func @transform_4(%arg0: i32) -> (i32, i32) {
    %c0_i32 = arith.constant 0 : i32
    %c0_i32_0 = arith.constant 0 : i32
    %c0_i32_1 = arith.constant 0 : i32
    return %c0_i32, %c0_i32_0 : i32, i32
  }
  func.func @transform_5(%arg0: i32) -> (i32, i32) {
    %c0_i32 = arith.constant 0 : i32
    %c0_i32_0 = arith.constant 0 : i32
    %c0_i32_1 = arith.constant 0 : i32
    return %c0_i32, %c0_i32_0 : i32, i32
  }
  func.func @transform_6(%arg0: i32) -> (i32, i32) {
    %c0_i32 = arith.constant 0 : i32
    %c0_i32_0 = arith.constant 0 : i32
    %c0_i32_1 = arith.constant 0 : i32
    return %c0_i32, %c0_i32_0 : i32, i32
  }
  func.func @transform_7(%arg0: i32) -> (i32, i32, i32) {
    %c0_i32 = arith.constant 0 : i32
    %c0_i32_0 = arith.constant 0 : i32
    %c0_i32_1 = arith.constant 0 : i32
    return %arg0, %c0_i32, %c0_i32_0 : i32, i32, i32
  }
  func.func @transform_8(%arg0: i32) -> (i32, i32) {
    %c0_i32 = arith.constant 0 : i32
    %c0_i32_0 = arith.constant 0 : i32
    %c0_i32_1 = arith.constant 0 : i32
    return %c0_i32, %c0_i32_0 : i32, i32
  }
  func.func @transform_9(%arg0: i32) -> (i32, i32) {
    %c0_i32 = arith.constant 0 : i32
    %c0_i32_0 = arith.constant 0 : i32
    %c0_i32_1 = arith.constant 0 : i32
    return %c0_i32, %c0_i32_0 : i32, i32
  }
  func.func @transform_10(%arg0: i32) -> (i32, i32) {
    %c0_i32 = arith.constant 0 : i32
    %c0_i32_0 = arith.constant 0 : i32
    %c0_i32_1 = arith.constant 0 : i32
    return %c0_i32, %c0_i32_0 : i32, i32
  }
  func.func @transform_11(%arg0: i32) -> (i32, i32, i32) {
    %c0_i32 = arith.constant 0 : i32
    %c0_i32_0 = arith.constant 0 : i32
    %c0_i32_1 = arith.constant 0 : i32
    return %arg0, %c0_i32, %c0_i32_0 : i32, i32, i32
  }
  func.func @transform_12(%arg0: i32) -> (i32, i32) {
    %c0_i32 = arith.constant 0 : i32
    %c0_i32_0 = arith.constant 0 : i32
    %c0_i32_1 = arith.constant 0 : i32
    return %c0_i32, %c0_i32_0 : i32, i32
  }
  func.func @transform_13(%arg0: i32) -> (i32, i32) {
    %c0_i32 = arith.constant 0 : i32
    %c0_i32_0 = arith.constant 0 : i32
    %c0_i32_1 = arith.constant 0 : i32
    return %c0_i32, %c0_i32_0 : i32, i32
  }
  func.func @transform_14(%arg0: i32) -> (i32, i32) {
    %c0_i32 = arith.constant 0 : i32
    %c0_i32_0 = arith.constant 0 : i32
    %c0_i32_1 = arith.constant 0 : i32
    return %c0_i32, %c0_i32_0 : i32, i32
  }
  func.func @transform_15(%arg0: i32) -> (i32, i32) {
    %c0_i32 = arith.constant 0 : i32
    %c0_i32_0 = arith.constant 0 : i32
    %c0_i32_1 = arith.constant 0 : i32
    return %c0_i32, %c0_i32_0 : i32, i32
  }
  func.func @transform_16(%arg0: i32) -> (i32, i32, i32) {
    %c0_i32 = arith.constant 0 : i32
    %c0_i32_0 = arith.constant 0 : i32
    %c0_i32_1 = arith.constant 0 : i32
    return %arg0, %c0_i32, %c0_i32_0 : i32, i32, i32
  }
}

</mosaic_0001>

<llo_original>
// kernel: tpu_custom_call.1
$region0: #{tpu_custom_call.1}
  #allocation0 [shape = 'u32[]', space=smem, size = 0x4, offset = 0x4, fixed_abs, tag = 'smem constant byte address 0x4 - core index']
  #allocation1 [shape = 'u32[72,128]{1,0:T(1,128)}', space=vmem, size = 0x9000, scoped, tag = 'internal scratch']
  %s0 = inlined_call_operand.vmem [shape: bf16[2,256,8], index: 0, kind: input, shape index: {}]
  %s1 = inlined_call_operand.vmem [shape: bf16[8,32], index: 1, kind: input, shape index: {}]
  %s2 = inlined_call_operand.vmem [shape: bf16[12,32], index: 2, kind: input, shape index: {}]
  %s3 = inlined_call_operand.vmem [shape: bf16[2,64,16], index: 3, kind: input, shape index: {}]
  %s4 = inlined_call_operand.vmem [shape: bf16[16,32], index: 4, kind: input, shape index: {}]
  %s5 = inlined_call_operand.vmem [shape: bf16[12,32], index: 5, kind: input, shape index: {}]
  %s6 = inlined_call_operand.vmem [shape: bf16[256,64], index: 6, kind: input, shape index: {}]
  %s7 = inlined_call_operand.vmem [shape: bf16[2,16,32], index: 7, kind: input, shape index: {}]
  %s8 = inlined_call_operand.vmem [shape: bf16[32,32], index: 8, kind: input, shape index: {}]
  %s9 = inlined_call_operand.vmem [shape: bf16[12,32], index: 9, kind: input, shape index: {}]
  %s10 = inlined_call_operand.vmem [shape: bf16[256,16], index: 10, kind: input, shape index: {}]
  %s11 = inlined_call_operand.vmem [shape: bf16[2,4,64], index: 11, kind: input, shape index: {}]
  %s12 = inlined_call_operand.vmem [shape: bf16[64,32], index: 12, kind: input, shape index: {}]
  %s13 = inlined_call_operand.vmem [shape: bf16[12,32], index: 13, kind: input, shape index: {}]
  %s14 = inlined_call_operand.vmem [shape: bf16[256,4], index: 14, kind: input, shape index: {}]
  %s15 = inlined_call_operand.vmem [shape: f32[12,1], index: 15, kind: input, shape index: {}]
  %s16 = inlined_call_operand.vmem [shape: f32[2,12,256], index: 16, kind: output, shape index: {}]
  %s17 = sld [smem:[#allocation0]]
  $region74: #{tpu_custom_call.1} parent=0
    _
  %s19 = ssub.s32 1, %s17
  %s20 = scalar_select 0, %s19, %s17
  // Predicated region
  $region2: #{tpu_custom_call.1} parent=0 // pred_check
    _
  $region3: #{tpu_custom_call.1} parent=0 // pred_check_branch
    %22 = sbr.rel (0) target = $region5
  $region4: #{tpu_custom_call.1} parent=0 // pred_region
    _
  $region5: #{tpu_custom_call.1} parent=0 // pred_fallthru
    _
  // Predicated region
  $region6: #{tpu_custom_call.1} parent=0 // pred_check
    _
  $region7: #{tpu_custom_call.1} parent=0 // pred_check_branch
    %24 = sbr.rel (0) target = $region9
  $region8: #{tpu_custom_call.1} parent=0 // pred_region
    _
  $region9: #{tpu_custom_call.1} parent=0 // pred_fallthru
    _
  // Predicated region
  $region10: #{tpu_custom_call.1} parent=0 // pred_check
    _
  $region11: #{tpu_custom_call.1} parent=0 // pred_check_branch
    %26 = sbr.rel (0) target = $region13
  $region12: #{tpu_custom_call.1} parent=0 // pred_region
    _
  $region13: #{tpu_custom_call.1} parent=0 // pred_fallthru
    _
  // Predicated region
  $region14: #{tpu_custom_call.1} parent=0 // pred_check
    _
  $region15: #{tpu_custom_call.1} parent=0 // pred_check_branch
    %28 = sbr.rel (0) target = $region17
  $region16: #{tpu_custom_call.1} parent=0 // pred_region
    _
  $region17: #{tpu_custom_call.1} parent=0 // pred_fallthru
    _
  // Predicated region
  $region18: #{tpu_custom_call.1} parent=0 // pred_check
    _
  $region19: #{tpu_custom_call.1} parent=0 // pred_check_branch
    %30 = sbr.rel (0) target = $region21
  $region20: #{tpu_custom_call.1} parent=0 // pred_region
    _
  $region21: #{tpu_custom_call.1} parent=0 // pred_fallthru
    _
  // Predicated region
  $region22: #{tpu_custom_call.1} parent=0 // pred_check
    _
  $region23: #{tpu_custom_call.1} parent=0 // pred_check_branch
    %32 = sbr.rel (0) target = $region25
  $region24: #{tpu_custom_call.1} parent=0 // pred_region
    _
  $region25: #{tpu_custom_call.1} parent=0 // pred_fallthru
    _
  // Predicated region
  $region26: #{tpu_custom_call.1} parent=0 // pred_check
    _
  $region27: #{tpu_custom_call.1} parent=0 // pred_check_branch
    %34 = sbr.rel (0) target = $region29
  $region28: #{tpu_custom_call.1} parent=0 // pred_region
    _
  $region29: #{tpu_custom_call.1} parent=0 // pred_fallthru
    _
  // Predicated region
  $region30: #{tpu_custom_call.1} parent=0 // pred_check
    _
  $region31: #{tpu_custom_call.1} parent=0 // pred_check_branch
    %36 = sbr.rel (0) target = $region33
  $region32: #{tpu_custom_call.1} parent=0 // pred_region
    _
  $region33: #{tpu_custom_call.1} parent=0 // pred_fallthru
    _
  // Predicated region
  $region34: #{tpu_custom_call.1} parent=0 // pred_check
    _
  $region35: #{tpu_custom_call.1} parent=0 // pred_check_branch
    %38 = sbr.rel (0) target = $region37
  $region36: #{tpu_custom_call.1} parent=0 // pred_region
    _
  $region37: #{tpu_custom_call.1} parent=0 // pred_fallthru
    _
  // Predicated region
  $region38: #{tpu_custom_call.1} parent=0 // pred_check
    _
  $region39: #{tpu_custom_call.1} parent=0 // pred_check_branch
    %40 = sbr.rel (0) target = $region41
  $region40: #{tpu_custom_call.1} parent=0 // pred_region
    _
  $region41: #{tpu_custom_call.1} parent=0 // pred_fallthru
    _
  // Predicated region
  $region42: #{tpu_custom_call.1} parent=0 // pred_check
    _
  $region43: #{tpu_custom_call.1} parent=0 // pred_check_branch
    %42 = sbr.rel (0) target = $region45
  $region44: #{tpu_custom_call.1} parent=0 // pred_region
    _
  $region45: #{tpu_custom_call.1} parent=0 // pred_fallthru
    _
  // Predicated region
  $region46: #{tpu_custom_call.1} parent=0 // pred_check
    _
  $region47: #{tpu_custom_call.1} parent=0 // pred_check_branch
    %44 = sbr.rel (0) target = $region49
  $region48: #{tpu_custom_call.1} parent=0 // pred_region
    _
  $region49: #{tpu_custom_call.1} parent=0 // pred_fallthru
    _
  // Predicated region
  $region50: #{tpu_custom_call.1} parent=0 // pred_check
    _
  $region51: #{tpu_custom_call.1} parent=0 // pred_check_branch
    %46 = sbr.rel (0) target = $region53
  $region52: #{tpu_custom_call.1} parent=0 // pred_region
    _
  $region53: #{tpu_custom_call.1} parent=0 // pred_fallthru
    _
  // Predicated region
  $region54: #{tpu_custom_call.1} parent=0 // pred_check
    _
  $region55: #{tpu_custom_call.1} parent=0 // pred_check_branch
    %48 = sbr.rel (0) target = $region57
  $region56: #{tpu_custom_call.1} parent=0 // pred_region
    _
  $region57: #{tpu_custom_call.1} parent=0 // pred_fallthru
    _
  // Predicated region
  $region58: #{tpu_custom_call.1} parent=0 // pred_check
    _
  $region59: #{tpu_custom_call.1} parent=0 // pred_check_branch
    %50 = sbr.rel (0) target = $region61
  $region60: #{tpu_custom_call.1} parent=0 // pred_region
    _
  $region61: #{tpu_custom_call.1} parent=0 // pred_fallthru
    _
  // Predicated region
  $region62: #{tpu_custom_call.1} parent=0 // pred_check
    _
  $region63: #{tpu_custom_call.1} parent=0 // pred_check_branch
    %52 = sbr.rel (0) target = $region65
  $region64: #{tpu_custom_call.1} parent=0 // pred_region
    _
  $region65: #{tpu_custom_call.1} parent=0 // pred_fallthru
    _
  %v54 = vld [vmem:[%s15] sm:$0xff]
  %v55 = vld [vmem:[%s15 + $0x8] sm:$0xf]
  %v56 = vld [vmem:[%s0] sm:$0xf]
  %v57 = vld [vmem:[%s0 + $0x4] sm:$0xf]
  %v58 = vld [vmem:[%s0 + $0x8] sm:$0xf]
  %v59 = vld [vmem:[%s0 + $0xc] sm:$0xf]
  %v60 = vld [vmem:[%s0 + $0x10] sm:$0xf]
  %v61 = vld [vmem:[%s0 + $0x14] sm:$0xf]
  %v62 = vld [vmem:[%s0 + $0x18] sm:$0xf]
  %v63 = vld [vmem:[%s0 + $0x1c] sm:$0xf]
  %v64 = vld [vmem:[%s0 + $0x20] sm:$0xf]
  %v65 = vld [vmem:[%s0 + $0x24] sm:$0xf]
  %v66 = vld [vmem:[%s0 + $0x28] sm:$0xf]
  %v67 = vld [vmem:[%s0 + $0x2c] sm:$0xf]
  %v68 = vld [vmem:[%s0 + $0x30] sm:$0xf]
  %v69 = vld [vmem:[%s0 + $0x34] sm:$0xf]
  %v70 = vld [vmem:[%s0 + $0x38] sm:$0xf]
  %v71 = vld [vmem:[%s0 + $0x3c] sm:$0xf]
  %v72 = vld [vmem:[%s0 + $0x40] sm:$0xf]
  %v73 = vld [vmem:[%s0 + $0x44] sm:$0xf]
  %v74 = vld [vmem:[%s0 + $0x48] sm:$0xf]
  %v75 = vld [vmem:[%s0 + $0x4c] sm:$0xf]
  %v76 = vld [vmem:[%s0 + $0x50] sm:$0xf]
  %v77 = vld [vmem:[%s0 + $0x54] sm:$0xf]
  %v78 = vld [vmem:[%s0 + $0x58] sm:$0xf]
  %v79 = vld [vmem:[%s0 + $0x5c] sm:$0xf]
  %v80 = vld [vmem:[%s0 + $0x60] sm:$0xf]
  %v81 = vld [vmem:[%s0 + $0x64] sm:$0xf]
  %v82 = vld [vmem:[%s0 + $0x68] sm:$0xf]
  %v83 = vld [vmem:[%s0 + $0x6c] sm:$0xf]
  %v84 = vld [vmem:[%s0 + $0x70] sm:$0xf]
  %v85 = vld [vmem:[%s0 + $0x74] sm:$0xf]
  %v86 = vld [vmem:[%s0 + $0x78] sm:$0xf]
  %v87 = vld [vmem:[%s0 + $0x7c] sm:$0xf]
  %v88 = vld [vmem:[%s1] sm:$0xf]
  %v121 = vunpack.c.l.b16 %v56
  %v122 = vunpack.c.l.b16 %v57
  %v123 = vunpack.c.l.b16 %v58
  %v124 = vunpack.c.l.b16 %v59
  %v125 = vunpack.c.l.b16 %v60
  %v126 = vunpack.c.l.b16 %v61
  %v127 = vunpack.c.l.b16 %v62
  %v128 = vunpack.c.l.b16 %v63
  %v129 = vunpack.c.l.b16 %v64
  %v130 = vunpack.c.l.b16 %v65
  %v131 = vunpack.c.l.b16 %v66
  %v132 = vunpack.c.l.b16 %v67
  %v133 = vunpack.c.l.b16 %v68
  %v134 = vunpack.c.l.b16 %v69
  %v135 = vunpack.c.l.b16 %v70
  %v136 = vunpack.c.l.b16 %v71
  %v137 = vunpack.c.l.b16 %v72
  %v138 = vunpack.c.l.b16 %v73
  %v139 = vunpack.c.l.b16 %v74
  %v140 = vunpack.c.l.b16 %v75
  %v141 = vunpack.c.l.b16 %v76
  %v142 = vunpack.c.l.b16 %v77
  %v143 = vunpack.c.l.b16 %v78
  %v144 = vunpack.c.l.b16 %v79
  %v145 = vunpack.c.l.b16 %v80
  %v146 = vunpack.c.l.b16 %v81
  %v147 = vunpack.c.l.b16 %v82
  %v148 = vunpack.c.l.b16 %v83
  %v149 = vunpack.c.l.b16 %v84
  %v150 = vunpack.c.l.b16 %v85
  %v151 = vunpack.c.l.b16 %v86
  %v152 = vunpack.c.l.b16 %v87
  %v153 = vpack.c.b16 %v122, %v121
  %v154 = vpack.c.b16 %v124, %v123
  %v155 = vpack.c.b16 %v126, %v125
  %v156 = vpack.c.b16 %v128, %v127
  %v157 = vpack.c.b16 %v130, %v129
  %v158 = vpack.c.b16 %v132, %v131
  %v159 = vpack.c.b16 %v134, %v133
  %v160 = vpack.c.b16 %v136, %v135
  %v161 = vpack.c.b16 %v138, %v137
  %v162 = vpack.c.b16 %v140, %v139
  %v163 = vpack.c.b16 %v142, %v141
  %v164 = vpack.c.b16 %v144, %v143
  %v165 = vpack.c.b16 %v146, %v145
  %v166 = vpack.c.b16 %v148, %v147
  %v167 = vpack.c.b16 %v150, %v149
  %v168 = vpack.c.b16 %v152, %v151
  %vm169 = vcmask 64512
  %v171 = vsel %vm169, %v153, 0
  %v174 = vsel %vm169, %v154, 0
  %v177 = vsel %vm169, %v155, 0
  %v180 = vsel %vm169, %v156, 0
  %v183 = vsel %vm169, %v157, 0
  %v186 = vsel %vm169, %v158, 0
  %v189 = vsel %vm169, %v159, 0
  %v192 = vsel %vm169, %v160, 0
  %v195 = vsel %vm169, %v161, 0
  %v198 = vsel %vm169, %v162, 0
  %v201 = vsel %vm169, %v163, 0
  %v204 = vsel %vm169, %v164, 0
  %v207 = vsel %vm169, %v165, 0
  %v210 = vsel %vm169, %v166, 0
  %v213 = vsel %vm169, %v167, 0
  %v216 = vsel %vm169, %v168, 0
  %vm218 = vcmask 1043456
  %v220 = vsel %vm218, %v88, 0
  %222 = vmatpush.bf16.msra.mxu0 0
  %223 = vmatpush.bf16.msra.mxu0 0
  %224 = vmatpush.bf16.msra.mxu0 0
  %225 = vmatpush.bf16.msra.mxu0 0
  %226 = vmatpush.bf16.msra.mxu0 0
  %227 = vmatpush.bf16.msra.mxu0 0
  %228 = vmatpush.bf16.msra.mxu0 0
  %229 = vmatpush.bf16.msra.mxu0 %v220
  %230 = vmatmul.bf16.gmra.mxu0 %v171
  %v231 = vpop.f32.mrf.mxu0
  %v232 = vadd.f32 0.0, %v231
  %v233 = vpop.f32.mrf.mxu0
  %v234 = vadd.f32 0.0, %v233
  %235 = vmatmul.bf16.gmra.mxu0 %v174
  %v236 = vpop.f32.mrf.mxu0
  %v237 = vadd.f32 0.0, %v236
  %v238 = vpop.f32.mrf.mxu0
  %v239 = vadd.f32 0.0, %v238
  %240 = vmatmul.bf16.gmra.mxu0 %v177
  %v241 = vpop.f32.mrf.mxu0
  %v242 = vadd.f32 0.0, %v241
  %v243 = vpop.f32.mrf.mxu0
  %v244 = vadd.f32 0.0, %v243
  %245 = vmatmul.bf16.gmra.mxu0 %v180
  %v246 = vpop.f32.mrf.mxu0
  %v247 = vadd.f32 0.0, %v246
  %v248 = vpop.f32.mrf.mxu0
  %v249 = vadd.f32 0.0, %v248
  %250 = vmatmul.bf16.gmra.mxu0 %v183
  %v251 = vpop.f32.mrf.mxu0
  %v252 = vadd.f32 0.0, %v251
  %v253 = vpop.f32.mrf.mxu0
  %v254 = vadd.f32 0.0, %v253
  %255 = vmatmul.bf16.gmra.mxu0 %v186
  %v256 = vpop.f32.mrf.mxu0
  %v257 = vadd.f32 0.0, %v256
  %v258 = vpop.f32.mrf.mxu0
  %v259 = vadd.f32 0.0, %v258
  %260 = vmatmul.bf16.gmra.mxu0 %v189
  %v261 = vpop.f32.mrf.mxu0
  %v262 = vadd.f32 0.0, %v261
  %v263 = vpop.f32.mrf.mxu0
  %v264 = vadd.f32 0.0, %v263
  %265 = vmatmul.bf16.gmra.mxu0 %v192
  %v266 = vpop.f32.mrf.mxu0
  %v267 = vadd.f32 0.0, %v266
  %v268 = vpop.f32.mrf.mxu0
  %v269 = vadd.f32 0.0, %v268
  %270 = vmatmul.bf16.gmra.mxu0 %v195
  %v271 = vpop.f32.mrf.mxu0
  %v272 = vadd.f32 0.0, %v271
  %v273 = vpop.f32.mrf.mxu0
  %v274 = vadd.f32 0.0, %v273
  %275 = vmatmul.bf16.gmra.mxu0 %v198
  %v276 = vpop.f32.mrf.mxu0
  %v277 = vadd.f32 0.0, %v276
  %v278 = vpop.f32.mrf.mxu0
  %v279 = vadd.f32 0.0, %v278
  %280 = vmatmul.bf16.gmra.mxu0 %v201
  %v281 = vpop.f32.mrf.mxu0
  %v282 = vadd.f32 0.0, %v281
  %v283 = vpop.f32.mrf.mxu0
  %v284 = vadd.f32 0.0, %v283
  %285 = vmatmul.bf16.gmra.mxu0 %v204
  %v286 = vpop.f32.mrf.mxu0
  %v287 = vadd.f32 0.0, %v286
  %v288 = vpop.f32.mrf.mxu0
  %v289 = vadd.f32 0.0, %v288
  %290 = vmatmul.bf16.gmra.mxu0 %v207
  %v291 = vpop.f32.mrf.mxu0
  %v292 = vadd.f32 0.0, %v291
  %v293 = vpop.f32.mrf.mxu0
  %v294 = vadd.f32 0.0, %v293
  %295 = vmatmul.bf16.gmra.mxu0 %v210
  %v296 = vpop.f32.mrf.mxu0
  %v297 = vadd.f32 0.0, %v296
  %v298 = vpop.f32.mrf.mxu0
  %v299 = vadd.f32 0.0, %v298
  %300 = vmatmul.bf16.gmra.mxu0 %v213
  %v301 = vpop.f32.mrf.mxu0
  %v302 = vadd.f32 0.0, %v301
  %v303 = vpop.f32.mrf.mxu0
  %v304 = vadd.f32 0.0, %v303
  %305 = vmatmul.bf16.gmra.mxu0 %v216
  %v306 = vpop.f32.mrf.mxu0
  %v307 = vadd.f32 0.0, %v306
  %v308 = vpop.f32.mrf.mxu0
  %v309 = vadd.f32 0.0, %v308
  %310 = vdwg.mxu0
  %v311 = vld [vmem:[%s2] sm:$0xf]
  %v312 = vld [vmem:[%s2 + $0x4] sm:$0x3]
  %v313 = vpack.c.bf16 %v234, %v232
  %v314 = vpack.c.bf16 %v239, %v237
  %v315 = vpack.c.bf16 %v244, %v242
  %v316 = vpack.c.bf16 %v249, %v247
  %v317 = vpack.c.bf16 %v254, %v252
  %v318 = vpack.c.bf16 %v259, %v257
  %v319 = vpack.c.bf16 %v264, %v262
  %v320 = vpack.c.bf16 %v269, %v267
  %v321 = vpack.c.bf16 %v274, %v272
  %v322 = vpack.c.bf16 %v279, %v277
  %v323 = vpack.c.bf16 %v284, %v282
  %v324 = vpack.c.bf16 %v289, %v287
  %v325 = vpack.c.bf16 %v294, %v292
  %v326 = vpack.c.bf16 %v299, %v297
  %v327 = vpack.c.bf16 %v304, %v302
  %v328 = vpack.c.bf16 %v309, %v307
  %v329 = vld [vmem:[%s3] sm:$0xf]
  %v330 = vld [vmem:[%s3 + $0x4] sm:$0xf]
  %v331 = vld [vmem:[%s3 + $0x8] sm:$0xf]
  %v332 = vld [vmem:[%s3 + $0xc] sm:$0xf]
  %v333 = vld [vmem:[%s3 + $0x10] sm:$0xf]
  %v334 = vld [vmem:[%s3 + $0x14] sm:$0xf]
  %v335 = vld [vmem:[%s3 + $0x18] sm:$0xf]
  %v336 = vld [vmem:[%s3 + $0x1c] sm:$0xf]
  %v337 = vld [vmem:[%s4] sm:$0xf]
  %v338 = vld [vmem:[%s4 + $0x4] sm:$0xf]
  %v347 = vunpack.c.l.b16 %v329
  %v348 = vunpack.c.l.b16 %v330
  %v349 = vunpack.c.l.b16 %v331
  %v350 = vunpack.c.l.b16 %v332
  %v351 = vunpack.c.l.b16 %v333
  %v352 = vunpack.c.l.b16 %v334
  %v353 = vunpack.c.l.b16 %v335
  %v354 = vunpack.c.l.b16 %v336
  %v355 = vpack.c.b16 %v348, %v347
  %v356 = vpack.c.b16 %v350, %v349
  %v357 = vpack.c.b16 %v352, %v351
  %v358 = vpack.c.b16 %v354, %v353
  %v361 = vunpack.c.l.b16 %v337
  %v362 = vunpack.c.l.b16 %v338
  %v363 = vpack.c.b16 %v362, %v361
  %vm365 = vcmask 130048
  %v367 = vsel %vm365, %v355, 0
  %v370 = vsel %vm365, %v356, 0
  %v373 = vsel %vm365, %v357, 0
  %v376 = vsel %vm365, %v358, 0
  %378 = vmatpush.bf16.msra.mxu0 0
  %379 = vmatpush.bf16.msra.mxu0 0
  %380 = vmatpush.bf16.msra.mxu0 0
  %381 = vmatpush.bf16.msra.mxu0 0
  %382 = vmatpush.bf16.msra.mxu0 0
  %383 = vmatpush.bf16.msra.mxu0 0
  %384 = vmatpush.bf16.msra.mxu0 0
  %385 = vmatpush.bf16.msra.mxu0 %v363
  %386 = vmatmul.bf16.gmra.mxu0 %v367
  %v387 = vpop.f32.mrf.mxu0
  %v388 = vadd.f32 0.0, %v387
  %v389 = vpop.f32.mrf.mxu0
  %v390 = vadd.f32 0.0, %v389
  %391 = vmatmul.bf16.gmra.mxu0 %v370
  %v392 = vpop.f32.mrf.mxu0
  %v393 = vadd.f32 0.0, %v392
  %v394 = vpop.f32.mrf.mxu0
  %v395 = vadd.f32 0.0, %v394
  %396 = vmatmul.bf16.gmra.mxu0 %v373
  %v397 = vpop.f32.mrf.mxu0
  %v398 = vadd.f32 0.0, %v397
  %v399 = vpop.f32.mrf.mxu0
  %v400 = vadd.f32 0.0, %v399
  %401 = vmatmul.bf16.gmra.mxu0 %v376
  %v402 = vpop.f32.mrf.mxu0
  %v403 = vadd.f32 0.0, %v402
  %v404 = vpop.f32.mrf.mxu0
  %v405 = vadd.f32 0.0, %v404
  %406 = vdwg.mxu0
  %v407 = vld [vmem:[%s6] sm:$0xf]
  %v408 = vld [vmem:[%s6 + $0x4] sm:$0xf]
  %v409 = vld [vmem:[%s6 + $0x8] sm:$0xf]
  %v410 = vld [vmem:[%s6 + $0xc] sm:$0xf]
  %v411 = vld [vmem:[%s6 + $0x10] sm:$0xf]
  %v412 = vld [vmem:[%s6 + $0x14] sm:$0xf]
  %v413 = vld [vmem:[%s6 + $0x18] sm:$0xf]
  %v414 = vld [vmem:[%s6 + $0x1c] sm:$0xf]
  %v415 = vld [vmem:[%s6 + $0x20] sm:$0xf]
  %v416 = vld [vmem:[%s6 + $0x24] sm:$0xf]
  %v417 = vld [vmem:[%s6 + $0x28] sm:$0xf]
  %v418 = vld [vmem:[%s6 + $0x2c] sm:$0xf]
  %v419 = vld [vmem:[%s6 + $0x30] sm:$0xf]
  %v420 = vld [vmem:[%s6 + $0x34] sm:$0xf]
  %v421 = vld [vmem:[%s6 + $0x38] sm:$0xf]
  %v422 = vld [vmem:[%s6 + $0x3c] sm:$0xf]
  %v423 = vld [vmem:[%s6 + $0x40] sm:$0xf]
  %v424 = vld [vmem:[%s6 + $0x44] sm:$0xf]
  %v425 = vld [vmem:[%s6 + $0x48] sm:$0xf]
  %v426 = vld [vmem:[%s6 + $0x4c] sm:$0xf]
  %v427 = vld [vmem:[%s6 + $0x50] sm:$0xf]
  %v428 = vld [vmem:[%s6 + $0x54] sm:$0xf]
  %v429 = vld [vmem:[%s6 + $0x58] sm:$0xf]
  %v430 = vld [vmem:[%s6 + $0x5c] sm:$0xf]
  %v431 = vld [vmem:[%s6 + $0x60] sm:$0xf]
  %v432 = vld [vmem:[%s6 + $0x64] sm:$0xf]
  %v433 = vld [vmem:[%s6 + $0x68] sm:$0xf]
  %v434 = vld [vmem:[%s6 + $0x6c] sm:$0xf]
  %v435 = vld [vmem:[%s6 + $0x70] sm:$0xf]
  %v436 = vld [vmem:[%s6 + $0x74] sm:$0xf]
  %v437 = vld [vmem:[%s6 + $0x78] sm:$0xf]
  %v438 = vld [vmem:[%s6 + $0x7c] sm:$0xf]
  %v439 = vpack.c.bf16 %v390, %v388
  %v440 = vpack.c.bf16 %v395, %v393
  %v441 = vpack.c.bf16 %v400, %v398
  %v442 = vpack.c.bf16 %v405, %v403
  %v475 = vunpack.c.l.b16 %v407
  %v476 = vunpack.c.l.b16 %v408
  %v477 = vunpack.c.l.b16 %v409
  %v478 = vunpack.c.l.b16 %v410
  %v479 = vunpack.c.l.b16 %v411
  %v480 = vunpack.c.l.b16 %v412
  %v481 = vunpack.c.l.b16 %v413
  %v482 = vunpack.c.l.b16 %v414
  %v483 = vunpack.c.l.b16 %v415
  %v484 = vunpack.c.l.b16 %v416
  %v485 = vunpack.c.l.b16 %v417
  %v486 = vunpack.c.l.b16 %v418
  %v487 = vunpack.c.l.b16 %v419
  %v488 = vunpack.c.l.b16 %v420
  %v489 = vunpack.c.l.b16 %v421
  %v490 = vunpack.c.l.b16 %v422
  %v491 = vunpack.c.l.b16 %v423
  %v492 = vunpack.c.l.b16 %v424
  %v493 = vunpack.c.l.b16 %v425
  %v494 = vunpack.c.l.b16 %v426
  %v495 = vunpack.c.l.b16 %v427
  %v496 = vunpack.c.l.b16 %v428
  %v497 = vunpack.c.l.b16 %v429
  %v498 = vunpack.c.l.b16 %v430
  %v499 = vunpack.c.l.b16 %v431
  %v500 = vunpack.c.l.b16 %v432
  %v501 = vunpack.c.l.b16 %v433
  %v502 = vunpack.c.l.b16 %v434
  %v503 = vunpack.c.l.b16 %v435
  %v504 = vunpack.c.l.b16 %v436
  %v505 = vunpack.c.l.b16 %v437
  %v506 = vunpack.c.l.b16 %v438
  %v507 = vpack.c.b16 %v476, %v475
  %v508 = vpack.c.b16 %v478, %v477
  %v509 = vpack.c.b16 %v480, %v479
  %v510 = vpack.c.b16 %v482, %v481
  %v511 = vpack.c.b16 %v484, %v483
  %v512 = vpack.c.b16 %v486, %v485
  %v513 = vpack.c.b16 %v488, %v487
  %v514 = vpack.c.b16 %v490, %v489
  %v515 = vpack.c.b16 %v492, %v491
  %v516 = vpack.c.b16 %v494, %v493
  %v517 = vpack.c.b16 %v496, %v495
  %v518 = vpack.c.b16 %v498, %v497
  %v519 = vpack.c.b16 %v500, %v499
  %v520 = vpack.c.b16 %v502, %v501
  %v521 = vpack.c.b16 %v504, %v503
  %v522 = vpack.c.b16 %v506, %v505
  %vm523 = vcmask 523264
  %v525 = vsel %vm523, %v507, 0
  %v528 = vsel %vm523, %v508, 0
  %v531 = vsel %vm523, %v509, 0
  %v534 = vsel %vm523, %v510, 0
  %v537 = vsel %vm523, %v511, 0
  %v540 = vsel %vm523, %v512, 0
  %v543 = vsel %vm523, %v513, 0
  %v546 = vsel %vm523, %v514, 0
  %v549 = vsel %vm523, %v515, 0
  %v552 = vsel %vm523, %v516, 0
  %v555 = vsel %vm523, %v517, 0
  %v558 = vsel %vm523, %v518, 0
  %v561 = vsel %vm523, %v519, 0
  %v564 = vsel %vm523, %v520, 0
  %v567 = vsel %vm523, %v521, 0
  %v570 = vsel %vm523, %v522, 0
  %572 = vmatpush.bf16.msra.mxu0 0
  %573 = vmatpush.bf16.msra.mxu0 0
  %574 = vmatpush.bf16.msra.mxu0 0
  %575 = vmatpush.bf16.msra.mxu0 0
  %576 = vmatpush.bf16.msra.mxu0 %v442
  %577 = vmatpush.bf16.msra.mxu0 %v441
  %578 = vmatpush.bf16.msra.mxu0 %v440
  %579 = vmatpush.bf16.msra.mxu0 %v439
  %580 = vmatmul.bf16.gmra.mxu0 %v525
  %v581 = vpop.f32.mrf.mxu0
  %v582 = vadd.f32 0.0, %v581
  %v583 = vpop.f32.mrf.mxu0
  %v584 = vadd.f32 0.0, %v583
  %585 = vmatmul.bf16.gmra.mxu0 %v528
  %v586 = vpop.f32.mrf.mxu0
  %v587 = vadd.f32 0.0, %v586
  %v588 = vpop.f32.mrf.mxu0
  %v589 = vadd.f32 0.0, %v588
  %590 = vmatmul.bf16.gmra.mxu0 %v531
  %v591 = vpop.f32.mrf.mxu0
  %v592 = vadd.f32 0.0, %v591
  %v593 = vpop.f32.mrf.mxu0
  %v594 = vadd.f32 0.0, %v593
  %595 = vmatmul.bf16.gmra.mxu0 %v534
  %v596 = vpop.f32.mrf.mxu0
  %v597 = vadd.f32 0.0, %v596
  %v598 = vpop.f32.mrf.mxu0
  %v599 = vadd.f32 0.0, %v598
  %600 = vmatmul.bf16.gmra.mxu0 %v537
  %v601 = vpop.f32.mrf.mxu0
  %v602 = vadd.f32 0.0, %v601
  %v603 = vpop.f32.mrf.mxu0
  %v604 = vadd.f32 0.0, %v603
  %605 = vmatmul.bf16.gmra.mxu0 %v540
  %v606 = vpop.f32.mrf.mxu0
  %v607 = vadd.f32 0.0, %v606
  %v608 = vpop.f32.mrf.mxu0
  %v609 = vadd.f32 0.0, %v608
  %610 = vmatmul.bf16.gmra.mxu0 %v543
  %v611 = vpop.f32.mrf.mxu0
  %v612 = vadd.f32 0.0, %v611
  %v613 = vpop.f32.mrf.mxu0
  %v614 = vadd.f32 0.0, %v613
  %615 = vmatmul.bf16.gmra.mxu0 %v546
  %v616 = vpop.f32.mrf.mxu0
  %v617 = vadd.f32 0.0, %v616
  %v618 = vpop.f32.mrf.mxu0
  %v619 = vadd.f32 0.0, %v618
  %620 = vmatmul.bf16.gmra.mxu0 %v549
  %v621 = vpop.f32.mrf.mxu0
  %v622 = vadd.f32 0.0, %v621
  %v623 = vpop.f32.mrf.mxu0
  %v624 = vadd.f32 0.0, %v623
  %625 = vmatmul.bf16.gmra.mxu0 %v552
  %v626 = vpop.f32.mrf.mxu0
  %v627 = vadd.f32 0.0, %v626
  %v628 = vpop.f32.mrf.mxu0
  %v629 = vadd.f32 0.0, %v628
  %630 = vmatmul.bf16.gmra.mxu0 %v555
  %v631 = vpop.f32.mrf.mxu0
  %v632 = vadd.f32 0.0, %v631
  %v633 = vpop.f32.mrf.mxu0
  %v634 = vadd.f32 0.0, %v633
  %635 = vmatmul.bf16.gmra.mxu0 %v558
  %v636 = vpop.f32.mrf.mxu0
  %v637 = vadd.f32 0.0, %v636
  %v638 = vpop.f32.mrf.mxu0
  %v639 = vadd.f32 0.0, %v638
  %640 = vmatmul.bf16.gmra.mxu0 %v561
  %v641 = vpop.f32.mrf.mxu0
  %v642 = vadd.f32 0.0, %v641
  %v643 = vpop.f32.mrf.mxu0
  %v644 = vadd.f32 0.0, %v643
  %645 = vmatmul.bf16.gmra.mxu0 %v564
  %v646 = vpop.f32.mrf.mxu0
  %v647 = vadd.f32 0.0, %v646
  %v648 = vpop.f32.mrf.mxu0
  %v649 = vadd.f32 0.0, %v648
  %650 = vmatmul.bf16.gmra.mxu0 %v567
  %v651 = vpop.f32.mrf.mxu0
  %v652 = vadd.f32 0.0, %v651
  %v653 = vpop.f32.mrf.mxu0
  %v654 = vadd.f32 0.0, %v653
  %655 = vmatmul.bf16.gmra.mxu0 %v570
  %v656 = vpop.f32.mrf.mxu0
  %v657 = vadd.f32 0.0, %v656
  %v658 = vpop.f32.mrf.mxu0
  %v659 = vadd.f32 0.0, %v658
  %660 = vdwg.mxu0
  %v661 = vld [vmem:[%s5] sm:$0xf]
  %v662 = vld [vmem:[%s5 + $0x4] sm:$0x3]
  %v663 = vpack.c.bf16 %v584, %v582
  %v664 = vpack.c.bf16 %v589, %v587
  %v665 = vpack.c.bf16 %v594, %v592
  %v666 = vpack.c.bf16 %v599, %v597
  %v667 = vpack.c.bf16 %v604, %v602
  %v668 = vpack.c.bf16 %v609, %v607
  %v669 = vpack.c.bf16 %v614, %v612
  %v670 = vpack.c.bf16 %v619, %v617
  %v671 = vpack.c.bf16 %v624, %v622
  %v672 = vpack.c.bf16 %v629, %v627
  %v673 = vpack.c.bf16 %v634, %v632
  %v674 = vpack.c.bf16 %v639, %v637
  %v675 = vpack.c.bf16 %v644, %v642
  %v676 = vpack.c.bf16 %v649, %v647
  %v677 = vpack.c.bf16 %v654, %v652
  %v678 = vpack.c.bf16 %v659, %v657
  %v681 = vunpack.c.l.b16 %v661
  %v682 = vunpack.c.l.b16 %v662
  %v683 = vpack.c.b16 %v682, %v681
  %vm684 = vcmask 261120
  %v686 = vsel %vm684, %v683, 0
  %v689 = vsel %vm684, %v663, 0
  %v692 = vsel %vm684, %v664, 0
  %v695 = vsel %vm684, %v665, 0
  %v698 = vsel %vm684, %v666, 0
  %v701 = vsel %vm684, %v667, 0
  %v704 = vsel %vm684, %v668, 0
  %v707 = vsel %vm684, %v669, 0
  %v710 = vsel %vm684, %v670, 0
  %v713 = vsel %vm684, %v671, 0
  %v716 = vsel %vm684, %v672, 0
  %v719 = vsel %vm684, %v673, 0
  %v722 = vsel %vm684, %v674, 0
  %v725 = vsel %vm684, %v675, 0
  %v728 = vsel %vm684, %v676, 0
  %v731 = vsel %vm684, %v677, 0
  %v734 = vsel %vm684, %v678, 0
  %736 = vmatpush.bf16.xpose.msra.mxu0 %v710
  %737 = vmatpush.bf16.xpose.msra.mxu0 %v707
  %738 = vmatpush.bf16.xpose.msra.mxu0 %v704
  %739 = vmatpush.bf16.xpose.msra.mxu0 %v701
  %740 = vmatpush.bf16.xpose.msra.mxu0 %v698
  %741 = vmatpush.bf16.xpose.msra.mxu0 %v695
  %742 = vmatpush.bf16.xpose.msra.mxu0 %v692
  %743 = vmatpush.bf16.xpose.msra.mxu0 %v689
  %744 = vmatmul.bf16.gmra.mxu0 %v686
  %v745 = vpop.f32.mrf.mxu0
  %v746 = vadd.f32 0.0, %v745
  %v747 = vpop.f32.mrf.mxu0
  %v748 = vadd.f32 0.0, %v747
  %749 = vdwg.mxu0
  %750 = vmatpush.bf16.xpose.msra.mxu0 %v734
  %751 = vmatpush.bf16.xpose.msra.mxu0 %v731
  %752 = vmatpush.bf16.xpose.msra.mxu0 %v728
  %753 = vmatpush.bf16.xpose.msra.mxu0 %v725
  %754 = vmatpush.bf16.xpose.msra.mxu0 %v722
  %755 = vmatpush.bf16.xpose.msra.mxu0 %v719
  %756 = vmatpush.bf16.xpose.msra.mxu0 %v716
  %757 = vmatpush.bf16.xpose.msra.mxu0 %v713
  %758 = vmatmul.bf16.gmra.mxu0 %v686
  %v759 = vpop.f32.mrf.mxu0
  %v760 = vadd.f32 0.0, %v759
  %v761 = vpop.f32.mrf.mxu0
  %v762 = vadd.f32 0.0, %v761
  %763 = vdwg.mxu0
  %v766 = vunpack.c.l.b16 %v311
  %v767 = vunpack.c.l.b16 %v312
  %v768 = vpack.c.b16 %v767, %v766
  %v770 = vsel %vm684, %v768, 0
  %v773 = vsel %vm684, %v313, 0
  %v776 = vsel %vm684, %v314, 0
  %v779 = vsel %vm684, %v315, 0
  %v782 = vsel %vm684, %v316, 0
  %v785 = vsel %vm684, %v317, 0
  %v788 = vsel %vm684, %v318, 0
  %v791 = vsel %vm684, %v319, 0
  %v794 = vsel %vm684, %v320, 0
  %v797 = vsel %vm684, %v321, 0
  %v800 = vsel %vm684, %v322, 0
  %v803 = vsel %vm684, %v323, 0
  %v806 = vsel %vm684, %v324, 0
  %v809 = vsel %vm684, %v325, 0
  %v812 = vsel %vm684, %v326, 0
  %v815 = vsel %vm684, %v327, 0
  %v818 = vsel %vm684, %v328, 0
  %820 = vmatpush.bf16.xpose.msra.mxu0 %v794
  %821 = vmatpush.bf16.xpose.msra.mxu0 %v791
  %822 = vmatpush.bf16.xpose.msra.mxu0 %v788
  %823 = vmatpush.bf16.xpose.msra.mxu0 %v785
  %824 = vmatpush.bf16.xpose.msra.mxu0 %v782
  %825 = vmatpush.bf16.xpose.msra.mxu0 %v779
  %826 = vmatpush.bf16.xpose.msra.mxu0 %v776
  %827 = vmatpush.bf16.xpose.msra.mxu0 %v773
  %828 = vmatmul.bf16.gmra.mxu0 %v770
  %v829 = vpop.f32.mrf.mxu0
  %v830 = vadd.f32 %v746, %v829
  %v831 = vpop.f32.mrf.mxu0
  %v832 = vadd.f32 %v748, %v831
  %833 = vdwg.mxu0
  %834 = vmatpush.bf16.xpose.msra.mxu0 %v818
  %835 = vmatpush.bf16.xpose.msra.mxu0 %v815
  %836 = vmatpush.bf16.xpose.msra.mxu0 %v812
  %837 = vmatpush.bf16.xpose.msra.mxu0 %v809
  %838 = vmatpush.bf16.xpose.msra.mxu0 %v806
  %839 = vmatpush.bf16.xpose.msra.mxu0 %v803
  %840 = vmatpush.bf16.xpose.msra.mxu0 %v800
  %841 = vmatpush.bf16.xpose.msra.mxu0 %v797
  %842 = vmatmul.bf16.gmra.mxu0 %v770
  %v843 = vpop.f32.mrf.mxu0
  %v844 = vadd.f32 %v760, %v843
  %v845 = vpop.f32.mrf.mxu0
  %v846 = vadd.f32 %v762, %v845
  %847 = vdwg.mxu0
  %v848 = vld [vmem:[%s7] sm:$0xf]
  %v849 = vld [vmem:[%s7 + $0x4] sm:$0xf]
  %v850 = vld [vmem:[%s8] sm:$0xf]
  %v851 = vld [vmem:[%s8 + $0x4] sm:$0xf]
  %v852 = vld [vmem:[%s8 + $0x8] sm:$0xf]
  %v853 = vld [vmem:[%s8 + $0xc] sm:$0xf]
  %v856 = vunpack.c.l.b16 %v848
  %v857 = vunpack.c.l.b16 %v849
  %v858 = vpack.c.b16 %v857, %v856
  %v863 = vunpack.c.l.b16 %v850
  %v864 = vunpack.c.l.b16 %v851
  %v865 = vunpack.c.l.b16 %v852
  %v866 = vunpack.c.l.b16 %v853
  %v867 = vpack.c.b16 %v864, %v863
  %v868 = vpack.c.b16 %v866, %v865
  %v872 = vsel %vm684, %v858, 0
  %874 = vmatpush.bf16.msra.mxu0 0
  %875 = vmatpush.bf16.msra.mxu0 0
  %876 = vmatpush.bf16.msra.mxu0 0
  %877 = vmatpush.bf16.msra.mxu0 0
  %878 = vmatpush.bf16.msra.mxu0 0
  %879 = vmatpush.bf16.msra.mxu0 0
  %880 = vmatpush.bf16.msra.mxu0 %v868
  %881 = vmatpush.bf16.msra.mxu0 %v867
  %882 = vmatmul.bf16.gmra.mxu0 %v872
  %v883 = vpop.f32.mrf.mxu0
  %v884 = vadd.f32 0.0, %v883
  %v885 = vpop.f32.mrf.mxu0
  %v886 = vadd.f32 0.0, %v885
  %887 = vdwg.mxu0
  %v888 = vld [vmem:[%s10] sm:$0xf]
  %v889 = vld [vmem:[%s10 + $0x4] sm:$0xf]
  %v890 = vld [vmem:[%s10 + $0x8] sm:$0xf]
  %v891 = vld [vmem:[%s10 + $0xc] sm:$0xf]
  %v892 = vld [vmem:[%s10 + $0x10] sm:$0xf]
  %v893 = vld [vmem:[%s10 + $0x14] sm:$0xf]
  %v894 = vld [vmem:[%s10 + $0x18] sm:$0xf]
  %v895 = vld [vmem:[%s10 + $0x1c] sm:$0xf]
  %v896 = vld [vmem:[%s10 + $0x20] sm:$0xf]
  %v897 = vld [vmem:[%s10 + $0x24] sm:$0xf]
  %v898 = vld [vmem:[%s10 + $0x28] sm:$0xf]
  %v899 = vld [vmem:[%s10 + $0x2c] sm:$0xf]
  %v900 = vld [vmem:[%s10 + $0x30] sm:$0xf]
  %v901 = vld [vmem:[%s10 + $0x34] sm:$0xf]
  %v902 = vld [vmem:[%s10 + $0x38] sm:$0xf]
  %v903 = vld [vmem:[%s10 + $0x3c] sm:$0xf]
  %v904 = vld [vmem:[%s10 + $0x40] sm:$0xf]
  %v905 = vld [vmem:[%s10 + $0x44] sm:$0xf]
  %v906 = vld [vmem:[%s10 + $0x48] sm:$0xf]
  %v907 = vld [vmem:[%s10 + $0x4c] sm:$0xf]
  %v908 = vld [vmem:[%s10 + $0x50] sm:$0xf]
  %v909 = vld [vmem:[%s10 + $0x54] sm:$0xf]
  %v910 = vld [vmem:[%s10 + $0x58] sm:$0xf]
  %v911 = vld [vmem:[%s10 + $0x5c] sm:$0xf]
  %v912 = vld [vmem:[%s10 + $0x60] sm:$0xf]
  %v913 = vld [vmem:[%s10 + $0x64] sm:$0xf]
  %v914 = vld [vmem:[%s10 + $0x68] sm:$0xf]
  %v915 = vld [vmem:[%s10 + $0x6c] sm:$0xf]
  %v916 = vld [vmem:[%s10 + $0x70] sm:$0xf]
  %v917 = vld [vmem:[%s10 + $0x74] sm:$0xf]
  %v918 = vld [vmem:[%s10 + $0x78] sm:$0xf]
  %v919 = vld [vmem:[%s10 + $0x7c] sm:$0xf]
  %v920 = vpack.c.bf16 %v886, %v884
  %v953 = vunpack.c.l.b16 %v888
  %v954 = vunpack.c.l.b16 %v889
  %v955 = vunpack.c.l.b16 %v890
  %v956 = vunpack.c.l.b16 %v891
  %v957 = vunpack.c.l.b16 %v892
  %v958 = vunpack.c.l.b16 %v893
  %v959 = vunpack.c.l.b16 %v894
  %v960 = vunpack.c.l.b16 %v895
  %v961 = vunpack.c.l.b16 %v896
  %v962 = vunpack.c.l.b16 %v897
  %v963 = vunpack.c.l.b16 %v898
  %v964 = vunpack.c.l.b16 %v899
  %v965 = vunpack.c.l.b16 %v900
  %v966 = vunpack.c.l.b16 %v901
  %v967 = vunpack.c.l.b16 %v902
  %v968 = vunpack.c.l.b16 %v903
  %v969 = vunpack.c.l.b16 %v904
  %v970 = vunpack.c.l.b16 %v905
  %v971 = vunpack.c.l.b16 %v906
  %v972 = vunpack.c.l.b16 %v907
  %v973 = vunpack.c.l.b16 %v908
  %v974 = vunpack.c.l.b16 %v909
  %v975 = vunpack.c.l.b16 %v910
  %v976 = vunpack.c.l.b16 %v911
  %v977 = vunpack.c.l.b16 %v912
  %v978 = vunpack.c.l.b16 %v913
  %v979 = vunpack.c.l.b16 %v914
  %v980 = vunpack.c.l.b16 %v915
  %v981 = vunpack.c.l.b16 %v916
  %v982 = vunpack.c.l.b16 %v917
  %v983 = vunpack.c.l.b16 %v918
  %v984 = vunpack.c.l.b16 %v919
  %v985 = vpack.c.b16 %v954, %v953
  %v986 = vpack.c.b16 %v956, %v955
  %v987 = vpack.c.b16 %v958, %v957
  %v988 = vpack.c.b16 %v960, %v959
  %v989 = vpack.c.b16 %v962, %v961
  %v990 = vpack.c.b16 %v964, %v963
  %v991 = vpack.c.b16 %v966, %v965
  %v992 = vpack.c.b16 %v968, %v967
  %v993 = vpack.c.b16 %v970, %v969
  %v994 = vpack.c.b16 %v972, %v971
  %v995 = vpack.c.b16 %v974, %v973
  %v996 = vpack.c.b16 %v976, %v975
  %v997 = vpack.c.b16 %v978, %v977
  %v998 = vpack.c.b16 %v980, %v979
  %v999 = vpack.c.b16 %v982, %v981
  %v1000 = vpack.c.b16 %v984, %v983
  %v1002 = vsel %vm365, %v985, 0
  %v1005 = vsel %vm365, %v986, 0
  %v1008 = vsel %vm365, %v987, 0
  %v1011 = vsel %vm365, %v988, 0
  %v1014 = vsel %vm365, %v989, 0
  %v1017 = vsel %vm365, %v990, 0
  %v1020 = vsel %vm365, %v991, 0
  %v1023 = vsel %vm365, %v992, 0
  %v1026 = vsel %vm365, %v993, 0
  %v1029 = vsel %vm365, %v994, 0
  %v1032 = vsel %vm365, %v995, 0
  %v1035 = vsel %vm365, %v996, 0
  %v1038 = vsel %vm365, %v997, 0
  %v1041 = vsel %vm365, %v998, 0
  %v1044 = vsel %vm365, %v999, 0
  %v1047 = vsel %vm365, %v1000, 0
  %1049 = vmatpush.bf16.msra.mxu0 0
  %1050 = vmatpush.bf16.msra.mxu0 0
  %1051 = vmatpush.bf16.msra.mxu0 0
  %1052 = vmatpush.bf16.msra.mxu0 0
  %1053 = vmatpush.bf16.msra.mxu0 0
  %1054 = vmatpush.bf16.msra.mxu0 0
  %1055 = vmatpush.bf16.msra.mxu0 0
  %1056 = vmatpush.bf16.msra.mxu0 %v920
  %1057 = vmatmul.bf16.gmra.mxu0 %v1002
  %v1058 = vpop.f32.mrf.mxu0
  %v1059 = vadd.f32 0.0, %v1058
  %v1060 = vpop.f32.mrf.mxu0
  %v1061 = vadd.f32 0.0, %v1060
  %1062 = vmatmul.bf16.gmra.mxu0 %v1005
  %v1063 = vpop.f32.mrf.mxu0
  %v1064 = vadd.f32 0.0, %v1063
  %v1065 = vpop.f32.mrf.mxu0
  %v1066 = vadd.f32 0.0, %v1065
  %1067 = vmatmul.bf16.gmra.mxu0 %v1008
  %v1068 = vpop.f32.mrf.mxu0
  %v1069 = vadd.f32 0.0, %v1068
  %v1070 = vpop.f32.mrf.mxu0
  %v1071 = vadd.f32 0.0, %v1070
  %1072 = vmatmul.bf16.gmra.mxu0 %v1011
  %v1073 = vpop.f32.mrf.mxu0
  %v1074 = vadd.f32 0.0, %v1073
  %v1075 = vpop.f32.mrf.mxu0
  %v1076 = vadd.f32 0.0, %v1075
  %1077 = vmatmul.bf16.gmra.mxu0 %v1014
  %v1078 = vpop.f32.mrf.mxu0
  %v1079 = vadd.f32 0.0, %v1078
  %v1080 = vpop.f32.mrf.mxu0
  %v1081 = vadd.f32 0.0, %v1080
  %1082 = vmatmul.bf16.gmra.mxu0 %v1017
  %v1083 = vpop.f32.mrf.mxu0
  %v1084 = vadd.f32 0.0, %v1083
  %v1085 = vpop.f32.mrf.mxu0
  %v1086 = vadd.f32 0.0, %v1085
  %1087 = vmatmul.bf16.gmra.mxu0 %v1020
  %v1088 = vpop.f32.mrf.mxu0
  %v1089 = vadd.f32 0.0, %v1088
  %v1090 = vpop.f32.mrf.mxu0
  %v1091 = vadd.f32 0.0, %v1090
  %1092 = vmatmul.bf16.gmra.mxu0 %v1023
  %v1093 = vpop.f32.mrf.mxu0
  %v1094 = vadd.f32 0.0, %v1093
  %v1095 = vpop.f32.mrf.mxu0
  %v1096 = vadd.f32 0.0, %v1095
  %1097 = vmatmul.bf16.gmra.mxu0 %v1026
  %v1098 = vpop.f32.mrf.mxu0
  %v1099 = vadd.f32 0.0, %v1098
  %v1100 = vpop.f32.mrf.mxu0
  %v1101 = vadd.f32 0.0, %v1100
  %1102 = vmatmul.bf16.gmra.mxu0 %v1029
  %v1103 = vpop.f32.mrf.mxu0
  %v1104 = vadd.f32 0.0, %v1103
  %v1105 = vpop.f32.mrf.mxu0
  %v1106 = vadd.f32 0.0, %v1105
  %1107 = vmatmul.bf16.gmra.mxu0 %v1032
  %v1108 = vpop.f32.mrf.mxu0
  %v1109 = vadd.f32 0.0, %v1108
  %v1110 = vpop.f32.mrf.mxu0
  %v1111 = vadd.f32 0.0, %v1110
  %1112 = vmatmul.bf16.gmra.mxu0 %v1035
  %v1113 = vpop.f32.mrf.mxu0
  %v1114 = vadd.f32 0.0, %v1113
  %v1115 = vpop.f32.mrf.mxu0
  %v1116 = vadd.f32 0.0, %v1115
  %1117 = vmatmul.bf16.gmra.mxu0 %v1038
  %v1118 = vpop.f32.mrf.mxu0
  %v1119 = vadd.f32 0.0, %v1118
  %v1120 = vpop.f32.mrf.mxu0
  %v1121 = vadd.f32 0.0, %v1120
  %1122 = vmatmul.bf16.gmra.mxu0 %v1041
  %v1123 = vpop.f32.mrf.mxu0
  %v1124 = vadd.f32 0.0, %v1123
  %v1125 = vpop.f32.mrf.mxu0
  %v1126 = vadd.f32 0.0, %v1125
  %1127 = vmatmul.bf16.gmra.mxu0 %v1044
  %v1128 = vpop.f32.mrf.mxu0
  %v1129 = vadd.f32 0.0, %v1128
  %v1130 = vpop.f32.mrf.mxu0
  %v1131 = vadd.f32 0.0, %v1130
  %1132 = vmatmul.bf16.gmra.mxu0 %v1047
  %v1133 = vpop.f32.mrf.mxu0
  %v1134 = vadd.f32 0.0, %v1133
  %v1135 = vpop.f32.mrf.mxu0
  %v1136 = vadd.f32 0.0, %v1135
  %1137 = vdwg.mxu0
  %v1138 = vld [vmem:[%s9] sm:$0xf]
  %v1139 = vld [vmem:[%s9 + $0x4] sm:$0x3]
  %v1140 = vpack.c.bf16 %v1061, %v1059
  %v1141 = vpack.c.bf16 %v1066, %v1064
  %v1142 = vpack.c.bf16 %v1071, %v1069
  %v1143 = vpack.c.bf16 %v1076, %v1074
  %v1144 = vpack.c.bf16 %v1081, %v1079
  %v1145 = vpack.c.bf16 %v1086, %v1084
  %v1146 = vpack.c.bf16 %v1091, %v1089
  %v1147 = vpack.c.bf16 %v1096, %v1094
  %v1148 = vpack.c.bf16 %v1101, %v1099
  %v1149 = vpack.c.bf16 %v1106, %v1104
  %v1150 = vpack.c.bf16 %v1111, %v1109
  %v1151 = vpack.c.bf16 %v1116, %v1114
  %v1152 = vpack.c.bf16 %v1121, %v1119
  %v1153 = vpack.c.bf16 %v1126, %v1124
  %v1154 = vpack.c.bf16 %v1131, %v1129
  %v1155 = vpack.c.bf16 %v1136, %v1134
  %v1158 = vunpack.c.l.b16 %v1138
  %v1159 = vunpack.c.l.b16 %v1139
  %v1160 = vpack.c.b16 %v1159, %v1158
  %v1162 = vsel %vm684, %v1160, 0
  %v1165 = vsel %vm684, %v1140, 0
  %v1168 = vsel %vm684, %v1141, 0
  %v1171 = vsel %vm684, %v1142, 0
  %v1174 = vsel %vm684, %v1143, 0
  %v1177 = vsel %vm684, %v1144, 0
  %v1180 = vsel %vm684, %v1145, 0
  %v1183 = vsel %vm684, %v1146, 0
  %v1186 = vsel %vm684, %v1147, 0
  %v1189 = vsel %vm684, %v1148, 0
  %v1192 = vsel %vm684, %v1149, 0
  %v1195 = vsel %vm684, %v1150, 0
  %v1198 = vsel %vm684, %v1151, 0
  %v1201 = vsel %vm684, %v1152, 0
  %v1204 = vsel %vm684, %v1153, 0
  %v1207 = vsel %vm684, %v1154, 0
  %v1210 = vsel %vm684, %v1155, 0
  %1212 = vmatpush.bf16.xpose.msra.mxu0 %v1186
  %1213 = vmatpush.bf16.xpose.msra.mxu0 %v1183
  %1214 = vmatpush.bf16.xpose.msra.mxu0 %v1180
  %1215 = vmatpush.bf16.xpose.msra.mxu0 %v1177
  %1216 = vmatpush.bf16.xpose.msra.mxu0 %v1174
  %1217 = vmatpush.bf16.xpose.msra.mxu0 %v1171
  %1218 = vmatpush.bf16.xpose.msra.mxu0 %v1168
  %1219 = vmatpush.bf16.xpose.msra.mxu0 %v1165
  %1220 = vmatmul.bf16.gmra.mxu0 %v1162
  %v1221 = vpop.f32.mrf.mxu0
  %v1222 = vadd.f32 0.0, %v1221
  %v1223 = vpop.f32.mrf.mxu0
  %v1224 = vadd.f32 0.0, %v1223
  %1225 = vdwg.mxu0
  %1226 = vmatpush.bf16.xpose.msra.mxu0 %v1210
  %1227 = vmatpush.bf16.xpose.msra.mxu0 %v1207
  %1228 = vmatpush.bf16.xpose.msra.mxu0 %v1204
  %1229 = vmatpush.bf16.xpose.msra.mxu0 %v1201
  %1230 = vmatpush.bf16.xpose.msra.mxu0 %v1198
  %1231 = vmatpush.bf16.xpose.msra.mxu0 %v1195
  %1232 = vmatpush.bf16.xpose.msra.mxu0 %v1192
  %1233 = vmatpush.bf16.xpose.msra.mxu0 %v1189
  %1234 = vmatmul.bf16.gmra.mxu0 %v1162
  %v1235 = vpop.f32.mrf.mxu0
  %v1236 = vadd.f32 0.0, %v1235
  %v1237 = vpop.f32.mrf.mxu0
  %v1238 = vadd.f32 0.0, %v1237
  %1239 = vdwg.mxu0
  %v1240 = vadd.f32 %v830, %v1222
  %v1241 = vadd.f32 %v844, %v1236
  %v1242 = vadd.f32 %v832, %v1224
  %v1243 = vadd.f32 %v846, %v1238
  %v1244 = vld [vmem:[%s11] sm:$0x3]
  %v1245 = vld [vmem:[%s12] sm:$0xf]
  %v1246 = vld [vmem:[%s12 + $0x4] sm:$0xf]
  %v1247 = vld [vmem:[%s12 + $0x8] sm:$0xf]
  %v1248 = vld [vmem:[%s12 + $0xc] sm:$0xf]
  %v1249 = vld [vmem:[%s12 + $0x10] sm:$0xf]
  %v1250 = vld [vmem:[%s12 + $0x14] sm:$0xf]
  %v1251 = vld [vmem:[%s12 + $0x18] sm:$0xf]
  %v1252 = vld [vmem:[%s12 + $0x1c] sm:$0xf]
  %v1261 = vunpack.c.l.b16 %v1245
  %v1262 = vunpack.c.l.b16 %v1246
  %v1263 = vunpack.c.l.b16 %v1247
  %v1264 = vunpack.c.l.b16 %v1248
  %v1265 = vunpack.c.l.b16 %v1249
  %v1266 = vunpack.c.l.b16 %v1250
  %v1267 = vunpack.c.l.b16 %v1251
  %v1268 = vunpack.c.l.b16 %v1252
  %v1269 = vpack.c.b16 %v1262, %v1261
  %v1270 = vpack.c.b16 %v1264, %v1263
  %v1271 = vpack.c.b16 %v1266, %v1265
  %v1272 = vpack.c.b16 %v1268, %v1267
  %v1278 = vsel %vm523, %v1244, 0
  %1280 = vmatpush.bf16.msra.mxu0 0
  %1281 = vmatpush.bf16.msra.mxu0 0
  %1282 = vmatpush.bf16.msra.mxu0 0
  %1283 = vmatpush.bf16.msra.mxu0 0
  %1284 = vmatpush.bf16.msra.mxu0 %v1272
  %1285 = vmatpush.bf16.msra.mxu0 %v1271
  %1286 = vmatpush.bf16.msra.mxu0 %v1270
  %1287 = vmatpush.bf16.msra.mxu0 %v1269
  %1288 = vmatmul.bf16.gmra.mxu0 %v1278
  %v1289 = vpop.f32.mrf.mxu0
  %v1290 = vadd.f32 0.0, %v1289
  %v1291 = vpop.f32.mrf.mxu0
  %1292 = vdwg.mxu0
  %v1293 = vld [vmem:[%s14] sm:$0xf]
  %v1294 = vld [vmem:[%s14 + $0x4] sm:$0xf]
  %v1295 = vld [vmem:[%s14 + $0x8] sm:$0xf]
  %v1296 = vld [vmem:[%s14 + $0xc] sm:$0xf]
  %v1297 = vld [vmem:[%s14 + $0x10] sm:$0xf]
  %v1298 = vld [vmem:[%s14 + $0x14] sm:$0xf]
  %v1299 = vld [vmem:[%s14 + $0x18] sm:$0xf]
  %v1300 = vld [vmem:[%s14 + $0x1c] sm:$0xf]
  %v1301 = vld [vmem:[%s14 + $0x20] sm:$0xf]
  %v1302 = vld [vmem:[%s14 + $0x24] sm:$0xf]
  %v1303 = vld [vmem:[%s14 + $0x28] sm:$0xf]
  %v1304 = vld [vmem:[%s14 + $0x2c] sm:$0xf]
  %v1305 = vld [vmem:[%s14 + $0x30] sm:$0xf]
  %v1306 = vld [vmem:[%s14 + $0x34] sm:$0xf]
  %v1307 = vld [vmem:[%s14 + $0x38] sm:$0xf]
  %v1308 = vld [vmem:[%s14 + $0x3c] sm:$0xf]
  %v1309 = vld [vmem:[%s14 + $0x40] sm:$0xf]
  %v1310 = vld [vmem:[%s14 + $0x44] sm:$0xf]
  %v1311 = vld [vmem:[%s14 + $0x48] sm:$0xf]
  %v1312 = vld [vmem:[%s14 + $0x4c] sm:$0xf]
  %v1313 = vld [vmem:[%s14 + $0x50] sm:$0xf]
  %v1314 = vld [vmem:[%s14 + $0x54] sm:$0xf]
  %v1315 = vld [vmem:[%s14 + $0x58] sm:$0xf]
  %v1316 = vld [vmem:[%s14 + $0x5c] sm:$0xf]
  %v1317 = vld [vmem:[%s14 + $0x60] sm:$0xf]
  %v1318 = vld [vmem:[%s14 + $0x64] sm:$0xf]
  %v1319 = vld [vmem:[%s14 + $0x68] sm:$0xf]
  %v1320 = vld [vmem:[%s14 + $0x6c] sm:$0xf]
  %v1321 = vld [vmem:[%s14 + $0x70] sm:$0xf]
  %v1322 = vld [vmem:[%s14 + $0x74] sm:$0xf]
  %v1323 = vld [vmem:[%s14 + $0x78] sm:$0xf]
  %v1324 = vld [vmem:[%s14 + $0x7c] sm:$0xf]
  %v1325 = vpack.c.bf16 %v1290, %v1290
  %v1358 = vunpack.c.l.b16 %v1293
  %v1359 = vunpack.c.l.b16 %v1294
  %v1360 = vunpack.c.l.b16 %v1295
  %v1361 = vunpack.c.l.b16 %v1296
  %v1362 = vunpack.c.l.b16 %v1297
  %v1363 = vunpack.c.l.b16 %v1298
  %v1364 = vunpack.c.l.b16 %v1299
  %v1365 = vunpack.c.l.b16 %v1300
  %v1366 = vunpack.c.l.b16 %v1301
  %v1367 = vunpack.c.l.b16 %v1302
  %v1368 = vunpack.c.l.b16 %v1303
  %v1369 = vunpack.c.l.b16 %v1304
  %v1370 = vunpack.c.l.b16 %v1305
  %v1371 = vunpack.c.l.b16 %v1306
  %v1372 = vunpack.c.l.b16 %v1307
  %v1373 = vunpack.c.l.b16 %v1308
  %v1374 = vunpack.c.l.b16 %v1309
  %v1375 = vunpack.c.l.b16 %v1310
  %v1376 = vunpack.c.l.b16 %v1311
  %v1377 = vunpack.c.l.b16 %v1312
  %v1378 = vunpack.c.l.b16 %v1313
  %v1379 = vunpack.c.l.b16 %v1314
  %v1380 = vunpack.c.l.b16 %v1315
  %v1381 = vunpack.c.l.b16 %v1316
  %v1382 = vunpack.c.l.b16 %v1317
  %v1383 = vunpack.c.l.b16 %v1318
  %v1384 = vunpack.c.l.b16 %v1319
  %v1385 = vunpack.c.l.b16 %v1320
  %v1386 = vunpack.c.l.b16 %v1321
  %v1387 = vunpack.c.l.b16 %v1322
  %v1388 = vunpack.c.l.b16 %v1323
  %v1389 = vunpack.c.l.b16 %v1324
  %v1390 = vpack.c.b16 %v1359, %v1358
  %v1391 = vpack.c.b16 %v1361, %v1360
  %v1392 = vpack.c.b16 %v1363, %v1362
  %v1393 = vpack.c.b16 %v1365, %v1364
  %v1394 = vpack.c.b16 %v1367, %v1366
  %v1395 = vpack.c.b16 %v1369, %v1368
  %v1396 = vpack.c.b16 %v1371, %v1370
  %v1397 = vpack.c.b16 %v1373, %v1372
  %v1398 = vpack.c.b16 %v1375, %v1374
  %v1399 = vpack.c.b16 %v1377, %v1376
  %v1400 = vpack.c.b16 %v1379, %v1378
  %v1401 = vpack.c.b16 %v1381, %v1380
  %v1402 = vpack.c.b16 %v1383, %v1382
  %v1403 = vpack.c.b16 %v1385, %v1384
  %v1404 = vpack.c.b16 %v1387, %v1386
  %v1405 = vpack.c.b16 %v1389, %v1388
  %vm1406 = vcmask 31744
  %v1408 = vsel %vm1406, %v1390, 0
  %v1411 = vsel %vm1406, %v1391, 0
  %v1414 = vsel %vm1406, %v1392, 0
  %v1417 = vsel %vm1406, %v1393, 0
  %v1420 = vsel %vm1406, %v1394, 0
  %v1423 = vsel %vm1406, %v1395, 0
  %v1426 = vsel %vm1406, %v1396, 0
  %v1429 = vsel %vm1406, %v1397, 0
  %v1432 = vsel %vm1406, %v1398, 0
  %v1435 = vsel %vm1406, %v1399, 0
  %v1438 = vsel %vm1406, %v1400, 0
  %v1441 = vsel %vm1406, %v1401, 0
  %v1444 = vsel %vm1406, %v1402, 0
  %v1447 = vsel %vm1406, %v1403, 0
  %v1450 = vsel %vm1406, %v1404, 0
  %v1453 = vsel %vm1406, %v1405, 0
  %vm1455 = vcmask 1041408
  %v1457 = vsel %vm1455, %v1325, 0
  %1459 = vmatpush.bf16.msra.mxu0 0
  %1460 = vmatpush.bf16.msra.mxu0 0
  %1461 = vmatpush.bf16.msra.mxu0 0
  %1462 = vmatpush.bf16.msra.mxu0 0
  %1463 = vmatpush.bf16.msra.mxu0 0
  %1464 = vmatpush.bf16.msra.mxu0 0
  %1465 = vmatpush.bf16.msra.mxu0 0
  %1466 = vmatpush.bf16.msra.mxu0 %v1457
  %1467 = vmatmul.bf16.gmra.mxu0 %v1408
  %v1468 = vpop.f32.mrf.mxu0
  %v1469 = vadd.f32 0.0, %v1468
  %v1470 = vpop.f32.mrf.mxu0
  %v1471 = vadd.f32 0.0, %v1470
  %1472 = vmatmul.bf16.gmra.mxu0 %v1411
  %v1473 = vpop.f32.mrf.mxu0
  %v1474 = vadd.f32 0.0, %v1473
  %v1475 = vpop.f32.mrf.mxu0
  %v1476 = vadd.f32 0.0, %v1475
  %1477 = vmatmul.bf16.gmra.mxu0 %v1414
  %v1478 = vpop.f32.mrf.mxu0
  %v1479 = vadd.f32 0.0, %v1478
  %v1480 = vpop.f32.mrf.mxu0
  %v1481 = vadd.f32 0.0, %v1480
  %1482 = vmatmul.bf16.gmra.mxu0 %v1417
  %v1483 = vpop.f32.mrf.mxu0
  %v1484 = vadd.f32 0.0, %v1483
  %v1485 = vpop.f32.mrf.mxu0
  %v1486 = vadd.f32 0.0, %v1485
  %1487 = vmatmul.bf16.gmra.mxu0 %v1420
  %v1488 = vpop.f32.mrf.mxu0
  %v1489 = vadd.f32 0.0, %v1488
  %v1490 = vpop.f32.mrf.mxu0
  %v1491 = vadd.f32 0.0, %v1490
  %1492 = vmatmul.bf16.gmra.mxu0 %v1423
  %v1493 = vpop.f32.mrf.mxu0
  %v1494 = vadd.f32 0.0, %v1493
  %v1495 = vpop.f32.mrf.mxu0
  %v1496 = vadd.f32 0.0, %v1495
  %1497 = vmatmul.bf16.gmra.mxu0 %v1426
  %v1498 = vpop.f32.mrf.mxu0
  %v1499 = vadd.f32 0.0, %v1498
  %v1500 = vpop.f32.mrf.mxu0
  %v1501 = vadd.f32 0.0, %v1500
  %1502 = vmatmul.bf16.gmra.mxu0 %v1429
  %v1503 = vpop.f32.mrf.mxu0
  %v1504 = vadd.f32 0.0, %v1503
  %v1505 = vpop.f32.mrf.mxu0
  %v1506 = vadd.f32 0.0, %v1505
  %1507 = vmatmul.bf16.gmra.mxu0 %v1432
  %v1508 = vpop.f32.mrf.mxu0
  %v1509 = vadd.f32 0.0, %v1508
  %v1510 = vpop.f32.mrf.mxu0
  %v1511 = vadd.f32 0.0, %v1510
  %1512 = vmatmul.bf16.gmra.mxu0 %v1435
  %v1513 = vpop.f32.mrf.mxu0
  %v1514 = vadd.f32 0.0, %v1513
  %v1515 = vpop.f32.mrf.mxu0
  %v1516 = vadd.f32 0.0, %v1515
  %1517 = vmatmul.bf16.gmra.mxu0 %v1438
  %v1518 = vpop.f32.mrf.mxu0
  %v1519 = vadd.f32 0.0, %v1518
  %v1520 = vpop.f32.mrf.mxu0
  %v1521 = vadd.f32 0.0, %v1520
  %1522 = vmatmul.bf16.gmra.mxu0 %v1441
  %v1523 = vpop.f32.mrf.mxu0
  %v1524 = vadd.f32 0.0, %v1523
  %v1525 = vpop.f32.mrf.mxu0
  %v1526 = vadd.f32 0.0, %v1525
  %1527 = vmatmul.bf16.gmra.mxu0 %v1444
  %v1528 = vpop.f32.mrf.mxu0
  %v1529 = vadd.f32 0.0, %v1528
  %v1530 = vpop.f32.mrf.mxu0
  %v1531 = vadd.f32 0.0, %v1530
  %1532 = vmatmul.bf16.gmra.mxu0 %v1447
  %v1533 = vpop.f32.mrf.mxu0
  %v1534 = vadd.f32 0.0, %v1533
  %v1535 = vpop.f32.mrf.mxu0
  %v1536 = vadd.f32 0.0, %v1535
  %1537 = vmatmul.bf16.gmra.mxu0 %v1450
  %v1538 = vpop.f32.mrf.mxu0
  %v1539 = vadd.f32 0.0, %v1538
  %v1540 = vpop.f32.mrf.mxu0
  %v1541 = vadd.f32 0.0, %v1540
  %1542 = vmatmul.bf16.gmra.mxu0 %v1453
  %v1543 = vpop.f32.mrf.mxu0
  %v1544 = vadd.f32 0.0, %v1543
  %v1545 = vpop.f32.mrf.mxu0
  %v1546 = vadd.f32 0.0, %v1545
  %1547 = vdwg.mxu0
  %v1548 = vld [vmem:[%s13] sm:$0xf]
  %v1549 = vld [vmem:[%s13 + $0x4] sm:$0x3]
  %v1550 = vpack.c.bf16 %v1471, %v1469
  %v1551 = vpack.c.bf16 %v1476, %v1474
  %v1552 = vpack.c.bf16 %v1481, %v1479
  %v1553 = vpack.c.bf16 %v1486, %v1484
  %v1554 = vpack.c.bf16 %v1491, %v1489
  %v1555 = vpack.c.bf16 %v1496, %v1494
  %v1556 = vpack.c.bf16 %v1501, %v1499
  %v1557 = vpack.c.bf16 %v1506, %v1504
  %v1558 = vpack.c.bf16 %v1511, %v1509
  %v1559 = vpack.c.bf16 %v1516, %v1514
  %v1560 = vpack.c.bf16 %v1521, %v1519
  %v1561 = vpack.c.bf16 %v1526, %v1524
  %v1562 = vpack.c.bf16 %v1531, %v1529
  %v1563 = vpack.c.bf16 %v1536, %v1534
  %v1564 = vpack.c.bf16 %v1541, %v1539
  %v1565 = vpack.c.bf16 %v1546, %v1544
  %v1568 = vunpack.c.l.b16 %v1548
  %v1569 = vunpack.c.l.b16 %v1549
  %v1570 = vpack.c.b16 %v1569, %v1568
  %v1572 = vsel %vm684, %v1570, 0
  %v1575 = vsel %vm684, %v1550, 0
  %v1578 = vsel %vm684, %v1551, 0
  %v1581 = vsel %vm684, %v1552, 0
  %v1584 = vsel %vm684, %v1553, 0
  %v1587 = vsel %vm684, %v1554, 0
  %v1590 = vsel %vm684, %v1555, 0
  %v1593 = vsel %vm684, %v1556, 0
  %v1596 = vsel %vm684, %v1557, 0
  %v1599 = vsel %vm684, %v1558, 0
  %v1602 = vsel %vm684, %v1559, 0
  %v1605 = vsel %vm684, %v1560, 0
  %v1608 = vsel %vm684, %v1561, 0
  %v1611 = vsel %vm684, %v1562, 0
  %v1614 = vsel %vm684, %v1563, 0
  %v1617 = vsel %vm684, %v1564, 0
  %v1620 = vsel %vm684, %v1565, 0
  %1622 = vmatpush.bf16.xpose.msra.mxu0 %v1596
  %1623 = vmatpush.bf16.xpose.msra.mxu0 %v1593
  %1624 = vmatpush.bf16.xpose.msra.mxu0 %v1590
  %1625 = vmatpush.bf16.xpose.msra.mxu0 %v1587
  %1626 = vmatpush.bf16.xpose.msra.mxu0 %v1584
  %1627 = vmatpush.bf16.xpose.msra.mxu0 %v1581
  %1628 = vmatpush.bf16.xpose.msra.mxu0 %v1578
  %1629 = vmatpush.bf16.xpose.msra.mxu0 %v1575
  %1630 = vmatmul.bf16.gmra.mxu0 %v1572
  %v1631 = vpop.f32.mrf.mxu0
  %v1632 = vadd.f32 0.0, %v1631
  %v1633 = vpop.f32.mrf.mxu0
  %v1634 = vadd.f32 0.0, %v1633
  %1635 = vdwg.mxu0
  %1636 = vmatpush.bf16.xpose.msra.mxu0 %v1620
  %1637 = vmatpush.bf16.xpose.msra.mxu0 %v1617
  %1638 = vmatpush.bf16.xpose.msra.mxu0 %v1614
  %1639 = vmatpush.bf16.xpose.msra.mxu0 %v1611
  %1640 = vmatpush.bf16.xpose.msra.mxu0 %v1608
  %1641 = vmatpush.bf16.xpose.msra.mxu0 %v1605
  %1642 = vmatpush.bf16.xpose.msra.mxu0 %v1602
  %1643 = vmatpush.bf16.xpose.msra.mxu0 %v1599
  %1644 = vmatmul.bf16.gmra.mxu0 %v1572
  %v1645 = vpop.f32.mrf.mxu0
  %v1646 = vadd.f32 0.0, %v1645
  %v1647 = vpop.f32.mrf.mxu0
  %v1648 = vadd.f32 0.0, %v1647
  %1649 = vdwg.mxu0
  %v1650 = vadd.f32 %v1240, %v1632
  %v1651 = vadd.f32 %v1241, %v1646
  %v1652 = vadd.f32 %v1242, %v1634
  %v1653 = vadd.f32 %v1243, %v1648
  %1655 = vset.pattern.permute.xlu0 0
  %1656 = vperm.xlu0 %1655, %v54
  %v1657 = vpop.permute.xlu0 %1656
  %1660 = vset.pattern.permute.xlu0 0
  %1661 = vperm.xlu0 %1660, %v55
  %v1662 = vpop.permute.xlu0 %1661
  %v1664 = vadd.f32 %v1650, %v1657
  %v1665 = vadd.f32 %v1651, %v1657
  %v1666 = vadd.f32 %v1652, %v1662
  %v1667 = vadd.f32 %v1653, %v1662
  %1668 = vst [vmem:[%s16] sm:$0xff] %v1664
  %1669 = vst [vmem:[%s16 + $0x8] sm:$0xff] %v1665
  %1670 = vst [vmem:[%s16 + $0x10] sm:$0xf] %v1666
  %1671 = vst [vmem:[%s16 + $0x18] sm:$0xf] %v1667
  %s1672 = scalar_lea.vmem %s0, 128
  %v1673 = vld [vmem:[%s1672] sm:$0xf]
  %v1674 = vld [vmem:[%s1672 + $0x4] sm:$0xf]
  %v1675 = vld [vmem:[%s1672 + $0x8] sm:$0xf]
  %v1676 = vld [vmem:[%s1672 + $0xc] sm:$0xf]
  %v1677 = vld [vmem:[%s1672 + $0x10] sm:$0xf]
  %v1678 = vld [vmem:[%s1672 + $0x14] sm:$0xf]
  %v1679 = vld [vmem:[%s1672 + $0x18] sm:$0xf]
  %v1680 = vld [vmem:[%s1672 + $0x1c] sm:$0xf]
  %v1681 = vld [vmem:[%s1672 + $0x20] sm:$0xf]
  %v1682 = vld [vmem:[%s1672 + $0x24] sm:$0xf]
  %v1683 = vld [vmem:[%s1672 + $0x28] sm:$0xf]
  %v1684 = vld [vmem:[%s1672 + $0x2c] sm:$0xf]
  %v1685 = vld [vmem:[%s1672 + $0x30] sm:$0xf]
  %v1686 = vld [vmem:[%s1672 + $0x34] sm:$0xf]
  %v1687 = vld [vmem:[%s1672 + $0x38] sm:$0xf]
  %v1688 = vld [vmem:[%s1672 + $0x3c] sm:$0xf]
  %v1689 = vld [vmem:[%s1672 + $0x40] sm:$0xf]
  %v1690 = vld [vmem:[%s1672 + $0x44] sm:$0xf]
  %v1691 = vld [vmem:[%s1672 + $0x48] sm:$0xf]
  %v1692 = vld [vmem:[%s1672 + $0x4c] sm:$0xf]
  %v1693 = vld [vmem:[%s1672 + $0x50] sm:$0xf]
  %v1694 = vld [vmem:[%s1672 + $0x54] sm:$0xf]
  %v1695 = vld [vmem:[%s1672 + $0x58] sm:$0xf]
  %v1696 = vld [vmem:[%s1672 + $0x5c] sm:$0xf]
  %v1697 = vld [vmem:[%s1672 + $0x60] sm:$0xf]
  %v1698 = vld [vmem:[%s1672 + $0x64] sm:$0xf]
  %v1699 = vld [vmem:[%s1672 + $0x68] sm:$0xf]
  %v1700 = vld [vmem:[%s1672 + $0x6c] sm:$0xf]
  %v1701 = vld [vmem:[%s1672 + $0x70] sm:$0xf]
  %v1702 = vld [vmem:[%s1672 + $0x74] sm:$0xf]
  %v1703 = vld [vmem:[%s1672 + $0x78] sm:$0xf]
  %v1704 = vld [vmem:[%s1672 + $0x7c] sm:$0xf]
  %v1705 = vld [vmem:[%s1] sm:$0xf]
  %v1738 = vunpack.c.l.b16 %v1673
  %v1739 = vunpack.c.l.b16 %v1674
  %v1740 = vunpack.c.l.b16 %v1675
  %v1741 = vunpack.c.l.b16 %v1676
  %v1742 = vunpack.c.l.b16 %v1677
  %v1743 = vunpack.c.l.b16 %v1678
  %v1744 = vunpack.c.l.b16 %v1679
  %v1745 = vunpack.c.l.b16 %v1680
  %v1746 = vunpack.c.l.b16 %v1681
  %v1747 = vunpack.c.l.b16 %v1682
  %v1748 = vunpack.c.l.b16 %v1683
  %v1749 = vunpack.c.l.b16 %v1684
  %v1750 = vunpack.c.l.b16 %v1685
  %v1751 = vunpack.c.l.b16 %v1686
  %v1752 = vunpack.c.l.b16 %v1687
  %v1753 = vunpack.c.l.b16 %v1688
  %v1754 = vunpack.c.l.b16 %v1689
  %v1755 = vunpack.c.l.b16 %v1690
  %v1756 = vunpack.c.l.b16 %v1691
  %v1757 = vunpack.c.l.b16 %v1692
  %v1758 = vunpack.c.l.b16 %v1693
  %v1759 = vunpack.c.l.b16 %v1694
  %v1760 = vunpack.c.l.b16 %v1695
  %v1761 = vunpack.c.l.b16 %v1696
  %v1762 = vunpack.c.l.b16 %v1697
  %v1763 = vunpack.c.l.b16 %v1698
  %v1764 = vunpack.c.l.b16 %v1699
  %v1765 = vunpack.c.l.b16 %v1700
  %v1766 = vunpack.c.l.b16 %v1701
  %v1767 = vunpack.c.l.b16 %v1702
  %v1768 = vunpack.c.l.b16 %v1703
  %v1769 = vunpack.c.l.b16 %v1704
  %v1770 = vpack.c.b16 %v1739, %v1738
  %v1771 = vpack.c.b16 %v1741, %v1740
  %v1772 = vpack.c.b16 %v1743, %v1742
  %v1773 = vpack.c.b16 %v1745, %v1744
  %v1774 = vpack.c.b16 %v1747, %v1746
  %v1775 = vpack.c.b16 %v1749, %v1748
  %v1776 = vpack.c.b16 %v1751, %v1750
  %v1777 = vpack.c.b16 %v1753, %v1752
  %v1778 = vpack.c.b16 %v1755, %v1754
  %v1779 = vpack.c.b16 %v1757, %v1756
  %v1780 = vpack.c.b16 %v1759, %v1758
  %v1781 = vpack.c.b16 %v1761, %v1760
  %v1782 = vpack.c.b16 %v1763, %v1762
  %v1783 = vpack.c.b16 %v1765, %v1764
  %v1784 = vpack.c.b16 %v1767, %v1766
  %v1785 = vpack.c.b16 %v1769, %v1768
  %v1787 = vsel %vm169, %v1770, 0
  %v1790 = vsel %vm169, %v1771, 0
  %v1793 = vsel %vm169, %v1772, 0
  %v1796 = vsel %vm169, %v1773, 0
  %v1799 = vsel %vm169, %v1774, 0
  %v1802 = vsel %vm169, %v1775, 0
  %v1805 = vsel %vm169, %v1776, 0
  %v1808 = vsel %vm169, %v1777, 0
  %v1811 = vsel %vm169, %v1778, 0
  %v1814 = vsel %vm169, %v1779, 0
  %v1817 = vsel %vm169, %v1780, 0
  %v1820 = vsel %vm169, %v1781, 0
  %v1823 = vsel %vm169, %v1782, 0
  %v1826 = vsel %vm169, %v1783, 0
  %v1829 = vsel %vm169, %v1784, 0
  %v1832 = vsel %vm169, %v1785, 0
  %v1835 = vsel %vm218, %v1705, 0
  %1837 = vmatpush.bf16.msra.mxu0 0
  %1838 = vmatpush.bf16.msra.mxu0 0
  %1839 = vmatpush.bf16.msra.mxu0 0
  %1840 = vmatpush.bf16.msra.mxu0 0
  %1841 = vmatpush.bf16.msra.mxu0 0
  %1842 = vmatpush.bf16.msra.mxu0 0
  %1843 = vmatpush.bf16.msra.mxu0 0
  %1844 = vmatpush.bf16.msra.mxu0 %v1835
  %1845 = vmatmul.bf16.gmra.mxu0 %v1787
  %v1846 = vpop.f32.mrf.mxu0
  %v1847 = vadd.f32 0.0, %v1846
  %v1848 = vpop.f32.mrf.mxu0
  %v1849 = vadd.f32 0.0, %v1848
  %1850 = vmatmul.bf16.gmra.mxu0 %v1790
  %v1851 = vpop.f32.mrf.mxu0
  %v1852 = vadd.f32 0.0, %v1851
  %v1853 = vpop.f32.mrf.mxu0
  %v1854 = vadd.f32 0.0, %v1853
  %1855 = vmatmul.bf16.gmra.mxu0 %v1793
  %v1856 = vpop.f32.mrf.mxu0
  %v1857 = vadd.f32 0.0, %v1856
  %v1858 = vpop.f32.mrf.mxu0
  %v1859 = vadd.f32 0.0, %v1858
  %1860 = vmatmul.bf16.gmra.mxu0 %v1796
  %v1861 = vpop.f32.mrf.mxu0
  %v1862 = vadd.f32 0.0, %v1861
  %v1863 = vpop.f32.mrf.mxu0
  %v1864 = vadd.f32 0.0, %v1863
  %1865 = vmatmul.bf16.gmra.mxu0 %v1799
  %v1866 = vpop.f32.mrf.mxu0
  %v1867 = vadd.f32 0.0, %v1866
  %v1868 = vpop.f32.mrf.mxu0
  %v1869 = vadd.f32 0.0, %v1868
  %1870 = vmatmul.bf16.gmra.mxu0 %v1802
  %v1871 = vpop.f32.mrf.mxu0
  %v1872 = vadd.f32 0.0, %v1871
  %v1873 = vpop.f32.mrf.mxu0
  %v1874 = vadd.f32 0.0, %v1873
  %1875 = vmatmul.bf16.gmra.mxu0 %v1805
  %v1876 = vpop.f32.mrf.mxu0
  %v1877 = vadd.f32 0.0, %v1876
  %v1878 = vpop.f32.mrf.mxu0
  %v1879 = vadd.f32 0.0, %v1878
  %1880 = vmatmul.bf16.gmra.mxu0 %v1808
  %v1881 = vpop.f32.mrf.mxu0
  %v1882 = vadd.f32 0.0, %v1881
  %v1883 = vpop.f32.mrf.mxu0
  %v1884 = vadd.f32 0.0, %v1883
  %1885 = vmatmul.bf16.gmra.mxu0 %v1811
  %v1886 = vpop.f32.mrf.mxu0
  %v1887 = vadd.f32 0.0, %v1886
  %v1888 = vpop.f32.mrf.mxu0
  %v1889 = vadd.f32 0.0, %v1888
  %1890 = vmatmul.bf16.gmra.mxu0 %v1814
  %v1891 = vpop.f32.mrf.mxu0
  %v1892 = vadd.f32 0.0, %v1891
  %v1893 = vpop.f32.mrf.mxu0
  %v1894 = vadd.f32 0.0, %v1893
  %1895 = vmatmul.bf16.gmra.mxu0 %v1817
  %v1896 = vpop.f32.mrf.mxu0
  %v1897 = vadd.f32 0.0, %v1896
  %v1898 = vpop.f32.mrf.mxu0
  %v1899 = vadd.f32 0.0, %v1898
  %1900 = vmatmul.bf16.gmra.mxu0 %v1820
  %v1901 = vpop.f32.mrf.mxu0
  %v1902 = vadd.f32 0.0, %v1901
  %v1903 = vpop.f32.mrf.mxu0
  %v1904 = vadd.f32 0.0, %v1903
  %1905 = vmatmul.bf16.gmra.mxu0 %v1823
  %v1906 = vpop.f32.mrf.mxu0
  %v1907 = vadd.f32 0.0, %v1906
  %v1908 = vpop.f32.mrf.mxu0
  %v1909 = vadd.f32 0.0, %v1908
  %1910 = vmatmul.bf16.gmra.mxu0 %v1826
  %v1911 = vpop.f32.mrf.mxu0
  %v1912 = vadd.f32 0.0, %v1911
  %v1913 = vpop.f32.mrf.mxu0
  %v1914 = vadd.f32 0.0, %v1913
  %1915 = vmatmul.bf16.gmra.mxu0 %v1829
  %v1916 = vpop.f32.mrf.mxu0
  %v1917 = vadd.f32 0.0, %v1916
  %v1918 = vpop.f32.mrf.mxu0
  %v1919 = vadd.f32 0.0, %v1918
  %1920 = vmatmul.bf16.gmra.mxu0 %v1832
  %v1921 = vpop.f32.mrf.mxu0
  %v1922 = vadd.f32 0.0, %v1921
  %v1923 = vpop.f32.mrf.mxu0
  %v1924 = vadd.f32 0.0, %v1923
  %1925 = vdwg.mxu0
  %v1926 = vld [vmem:[%s2] sm:$0xf]
  %v1927 = vld [vmem:[%s2 + $0x4] sm:$0x3]
  %v1928 = vpack.c.bf16 %v1849, %v1847
  %v1929 = vpack.c.bf16 %v1854, %v1852
  %v1930 = vpack.c.bf16 %v1859, %v1857
  %v1931 = vpack.c.bf16 %v1864, %v1862
  %v1932 = vpack.c.bf16 %v1869, %v1867
  %v1933 = vpack.c.bf16 %v1874, %v1872
  %v1934 = vpack.c.bf16 %v1879, %v1877
  %v1935 = vpack.c.bf16 %v1884, %v1882
  %v1936 = vpack.c.bf16 %v1889, %v1887
  %v1937 = vpack.c.bf16 %v1894, %v1892
  %v1938 = vpack.c.bf16 %v1899, %v1897
  %v1939 = vpack.c.bf16 %v1904, %v1902
  %v1940 = vpack.c.bf16 %v1909, %v1907
  %v1941 = vpack.c.bf16 %v1914, %v1912
  %v1942 = vpack.c.bf16 %v1919, %v1917
  %v1943 = vpack.c.bf16 %v1924, %v1922
  %s1944 = scalar_lea.vmem %s3, 32
  %v1945 = vld [vmem:[%s1944] sm:$0xf]
  %v1946 = vld [vmem:[%s1944 + $0x4] sm:$0xf]
  %v1947 = vld [vmem:[%s1944 + $0x8] sm:$0xf]
  %v1948 = vld [vmem:[%s1944 + $0xc] sm:$0xf]
  %v1949 = vld [vmem:[%s1944 + $0x10] sm:$0xf]
  %v1950 = vld [vmem:[%s1944 + $0x14] sm:$0xf]
  %v1951 = vld [vmem:[%s1944 + $0x18] sm:$0xf]
  %v1952 = vld [vmem:[%s1944 + $0x1c] sm:$0xf]
  %v1953 = vld [vmem:[%s4] sm:$0xf]
  %v1954 = vld [vmem:[%s4 + $0x4] sm:$0xf]
  %v1963 = vunpack.c.l.b16 %v1945
  %v1964 = vunpack.c.l.b16 %v1946
  %v1965 = vunpack.c.l.b16 %v1947
  %v1966 = vunpack.c.l.b16 %v1948
  %v1967 = vunpack.c.l.b16 %v1949
  %v1968 = vunpack.c.l.b16 %v1950
  %v1969 = vunpack.c.l.b16 %v1951
  %v1970 = vunpack.c.l.b16 %v1952
  %v1971 = vpack.c.b16 %v1964, %v1963
  %v1972 = vpack.c.b16 %v1966, %v1965
  %v1973 = vpack.c.b16 %v1968, %v1967
  %v1974 = vpack.c.b16 %v1970, %v1969
  %v1977 = vunpack.c.l.b16 %v1953
  %v1978 = vunpack.c.l.b16 %v1954
  %v1979 = vpack.c.b16 %v1978, %v1977
  %v1982 = vsel %vm365, %v1971, 0
  %v1985 = vsel %vm365, %v1972, 0
  %v1988 = vsel %vm365, %v1973, 0
  %v1991 = vsel %vm365, %v1974, 0
  %1993 = vmatpush.bf16.msra.mxu0 0
  %1994 = vmatpush.bf16.msra.mxu0 0
  %1995 = vmatpush.bf16.msra.mxu0 0
  %1996 = vmatpush.bf16.msra.mxu0 0
  %1997 = vmatpush.bf16.msra.mxu0 0
  %1998 = vmatpush.bf16.msra.mxu0 0
  %1999 = vmatpush.bf16.msra.mxu0 0
  %2000 = vmatpush.bf16.msra.mxu0 %v1979
  %2001 = vmatmul.bf16.gmra.mxu0 %v1982
  %v2002 = vpop.f32.mrf.mxu0
  %v2003 = vadd.f32 0.0, %v2002
  %v2004 = vpop.f32.mrf.mxu0
  %v2005 = vadd.f32 0.0, %v2004
  %2006 = vmatmul.bf16.gmra.mxu0 %v1985
  %v2007 = vpop.f32.mrf.mxu0
  %v2008 = vadd.f32 0.0, %v2007
  %v2009 = vpop.f32.mrf.mxu0
  %v2010 = vadd.f32 0.0, %v2009
  %2011 = vmatmul.bf16.gmra.mxu0 %v1988
  %v2012 = vpop.f32.mrf.mxu0
  %v2013 = vadd.f32 0.0, %v2012
  %v2014 = vpop.f32.mrf.mxu0
  %v2015 = vadd.f32 0.0, %v2014
  %2016 = vmatmul.bf16.gmra.mxu0 %v1991
  %v2017 = vpop.f32.mrf.mxu0
  %v2018 = vadd.f32 0.0, %v2017
  %v2019 = vpop.f32.mrf.mxu0
  %v2020 = vadd.f32 0.0, %v2019
  %2021 = vdwg.mxu0
  %v2022 = vld [vmem:[%s6] sm:$0xf]
  %v2023 = vld [vmem:[%s6 + $0x4] sm:$0xf]
  %v2024 = vld [vmem:[%s6 + $0x8] sm:$0xf]
  %v2025 = vld [vmem:[%s6 + $0xc] sm:$0xf]
  %v2026 = vld [vmem:[%s6 + $0x10] sm:$0xf]
  %v2027 = vld [vmem:[%s6 + $0x14] sm:$0xf]
  %v2028 = vld [vmem:[%s6 + $0x18] sm:$0xf]
  %v2029 = vld [vmem:[%s6 + $0x1c] sm:$0xf]
  %v2030 = vld [vmem:[%s6 + $0x20] sm:$0xf]
  %v2031 = vld [vmem:[%s6 + $0x24] sm:$0xf]
  %v2032 = vld [vmem:[%s6 + $0x28] sm:$0xf]
  %v2033 = vld [vmem:[%s6 + $0x2c] sm:$0xf]
  %v2034 = vld [vmem:[%s6 + $0x30] sm:$0xf]
  %v2035 = vld [vmem:[%s6 + $0x34] sm:$0xf]
  %v2036 = vld [vmem:[%s6 + $0x38] sm:$0xf]
  %v2037 = vld [vmem:[%s6 + $0x3c] sm:$0xf]
  %v2038 = vld [vmem:[%s6 + $0x40] sm:$0xf]
  %v2039 = vld [vmem:[%s6 + $0x44] sm:$0xf]
  %v2040 = vld [vmem:[%s6 + $0x48] sm:$0xf]
  %v2041 = vld [vmem:[%s6 + $0x4c] sm:$0xf]
  %v2042 = vld [vmem:[%s6 + $0x50] sm:$0xf]
  %v2043 = vld [vmem:[%s6 + $0x54] sm:$0xf]
  %v2044 = vld [vmem:[%s6 + $0x58] sm:$0xf]
  %v2045 = vld [vmem:[%s6 + $0x5c] sm:$0xf]
  %v2046 = vld [vmem:[%s6 + $0x60] sm:$0xf]
  %v2047 = vld [vmem:[%s6 + $0x64] sm:$0xf]
  %v2048 = vld [vmem:[%s6 + $0x68] sm:$0xf]
  %v2049 = vld [vmem:[%s6 + $0x6c] sm:$0xf]
  %v2050 = vld [vmem:[%s6 + $0x70] sm:$0xf]
  %v2051 = vld [vmem:[%s6 + $0x74] sm:$0xf]
  %v2052 = vld [vmem:[%s6 + $0x78] sm:$0xf]
  %v2053 = vld [vmem:[%s6 + $0x7c] sm:$0xf]
  %v2054 = vpack.c.bf16 %v2005, %v2003
  %v2055 = vpack.c.bf16 %v2010, %v2008
  %v2056 = vpack.c.bf16 %v2015, %v2013
  %v2057 = vpack.c.bf16 %v2020, %v2018
  %v2090 = vunpack.c.l.b16 %v2022
  %v2091 = vunpack.c.l.b16 %v2023
  %v2092 = vunpack.c.l.b16 %v2024
  %v2093 = vunpack.c.l.b16 %v2025
  %v2094 = vunpack.c.l.b16 %v2026
  %v2095 = vunpack.c.l.b16 %v2027
  %v2096 = vunpack.c.l.b16 %v2028
  %v2097 = vunpack.c.l.b16 %v2029
  %v2098 = vunpack.c.l.b16 %v2030
  %v2099 = vunpack.c.l.b16 %v2031
  %v2100 = vunpack.c.l.b16 %v2032
  %v2101 = vunpack.c.l.b16 %v2033
  %v2102 = vunpack.c.l.b16 %v2034
  %v2103 = vunpack.c.l.b16 %v2035
  %v2104 = vunpack.c.l.b16 %v2036
  %v2105 = vunpack.c.l.b16 %v2037
  %v2106 = vunpack.c.l.b16 %v2038
  %v2107 = vunpack.c.l.b16 %v2039
  %v2108 = vunpack.c.l.b16 %v2040
  %v2109 = vunpack.c.l.b16 %v2041
  %v2110 = vunpack.c.l.b16 %v2042
  %v2111 = vunpack.c.l.b16 %v2043
  %v2112 = vunpack.c.l.b16 %v2044
  %v2113 = vunpack.c.l.b16 %v2045
  %v2114 = vunpack.c.l.b16 %v2046
  %v2115 = vunpack.c.l.b16 %v2047
  %v2116 = vunpack.c.l.b16 %v2048
  %v2117 = vunpack.c.l.b16 %v2049
  %v2118 = vunpack.c.l.b16 %v2050
  %v2119 = vunpack.c.l.b16 %v2051
  %v2120 = vunpack.c.l.b16 %v2052
  %v2121 = vunpack.c.l.b16 %v2053
  %v2122 = vpack.c.b16 %v2091, %v2090
  %v2123 = vpack.c.b16 %v2093, %v2092
  %v2124 = vpack.c.b16 %v2095, %v2094
  %v2125 = vpack.c.b16 %v2097, %v2096
  %v2126 = vpack.c.b16 %v2099, %v2098
  %v2127 = vpack.c.b16 %v2101, %v2100
  %v2128 = vpack.c.b16 %v2103, %v2102
  %v2129 = vpack.c.b16 %v2105, %v2104
  %v2130 = vpack.c.b16 %v2107, %v2106
  %v2131 = vpack.c.b16 %v2109, %v2108
  %v2132 = vpack.c.b16 %v2111, %v2110
  %v2133 = vpack.c.b16 %v2113, %v2112
  %v2134 = vpack.c.b16 %v2115, %v2114
  %v2135 = vpack.c.b16 %v2117, %v2116
  %v2136 = vpack.c.b16 %v2119, %v2118
  %v2137 = vpack.c.b16 %v2121, %v2120
  %v2139 = vsel %vm523, %v2122, 0
  %v2142 = vsel %vm523, %v2123, 0
  %v2145 = vsel %vm523, %v2124, 0
  %v2148 = vsel %vm523, %v2125, 0
  %v2151 = vsel %vm523, %v2126, 0
  %v2154 = vsel %vm523, %v2127, 0
  %v2157 = vsel %vm523, %v2128, 0
  %v2160 = vsel %vm523, %v2129, 0
  %v2163 = vsel %vm523, %v2130, 0
  %v2166 = vsel %vm523, %v2131, 0
  %v2169 = vsel %vm523, %v2132, 0
  %v2172 = vsel %vm523, %v2133, 0
  %v2175 = vsel %vm523, %v2134, 0
  %v2178 = vsel %vm523, %v2135, 0
  %v2181 = vsel %vm523, %v2136, 0
  %v2184 = vsel %vm523, %v2137, 0
  %2186 = vmatpush.bf16.msra.mxu0 0
  %2187 = vmatpush.bf16.msra.mxu0 0
  %2188 = vmatpush.bf16.msra.mxu0 0
  %2189 = vmatpush.bf16.msra.mxu0 0
  %2190 = vmatpush.bf16.msra.mxu0 %v2057
  %2191 = vmatpush.bf16.msra.mxu0 %v2056
  %2192 = vmatpush.bf16.msra.mxu0 %v2055
  %2193 = vmatpush.bf16.msra.mxu0 %v2054
  %2194 = vmatmul.bf16.gmra.mxu0 %v2139
  %v2195 = vpop.f32.mrf.mxu0
  %v2196 = vadd.f32 0.0, %v2195
  %v2197 = vpop.f32.mrf.mxu0
  %v2198 = vadd.f32 0.0, %v2197
  %2199 = vmatmul.bf16.gmra.mxu0 %v2142
  %v2200 = vpop.f32.mrf.mxu0
  %v2201 = vadd.f32 0.0, %v2200
  %v2202 = vpop.f32.mrf.mxu0
  %v2203 = vadd.f32 0.0, %v2202
  %2204 = vmatmul.bf16.gmra.mxu0 %v2145
  %v2205 = vpop.f32.mrf.mxu0
  %v2206 = vadd.f32 0.0, %v2205
  %v2207 = vpop.f32.mrf.mxu0
  %v2208 = vadd.f32 0.0, %v2207
  %2209 = vmatmul.bf16.gmra.mxu0 %v2148
  %v2210 = vpop.f32.mrf.mxu0
  %v2211 = vadd.f32 0.0, %v2210
  %v2212 = vpop.f32.mrf.mxu0
  %v2213 = vadd.f32 0.0, %v2212
  %2214 = vmatmul.bf16.gmra.mxu0 %v2151
  %v2215 = vpop.f32.mrf.mxu0
  %v2216 = vadd.f32 0.0, %v2215
  %v2217 = vpop.f32.mrf.mxu0
  %v2218 = vadd.f32 0.0, %v2217
  %2219 = vmatmul.bf16.gmra.mxu0 %v2154
  %v2220 = vpop.f32.mrf.mxu0
  %v2221 = vadd.f32 0.0, %v2220
  %v2222 = vpop.f32.mrf.mxu0
  %v2223 = vadd.f32 0.0, %v2222
  %2224 = vmatmul.bf16.gmra.mxu0 %v2157
  %v2225 = vpop.f32.mrf.mxu0
  %v2226 = vadd.f32 0.0, %v2225
  %v2227 = vpop.f32.mrf.mxu0
  %v2228 = vadd.f32 0.0, %v2227
  %2229 = vmatmul.bf16.gmra.mxu0 %v2160
  %v2230 = vpop.f32.mrf.mxu0
  %v2231 = vadd.f32 0.0, %v2230
  %v2232 = vpop.f32.mrf.mxu0
  %v2233 = vadd.f32 0.0, %v2232
  %2234 = vmatmul.bf16.gmra.mxu0 %v2163
  %v2235 = vpop.f32.mrf.mxu0
  %v2236 = vadd.f32 0.0, %v2235
  %v2237 = vpop.f32.mrf.mxu0
  %v2238 = vadd.f32 0.0, %v2237
  %2239 = vmatmul.bf16.gmra.mxu0 %v2166
  %v2240 = vpop.f32.mrf.mxu0
  %v2241 = vadd.f32 0.0, %v2240
  %v2242 = vpop.f32.mrf.mxu0
  %v2243 = vadd.f32 0.0, %v2242
  %2244 = vmatmul.bf16.gmra.mxu0 %v2169
  %v2245 = vpop.f32.mrf.mxu0
  %v2246 = vadd.f32 0.0, %v2245
  %v2247 = vpop.f32.mrf.mxu0
  %v2248 = vadd.f32 0.0, %v2247
  %2249 = vmatmul.bf16.gmra.mxu0 %v2172
  %v2250 = vpop.f32.mrf.mxu0
  %v2251 = vadd.f32 0.0, %v2250
  %v2252 = vpop.f32.mrf.mxu0
  %v2253 = vadd.f32 0.0, %v2252
  %2254 = vmatmul.bf16.gmra.mxu0 %v2175
  %v2255 = vpop.f32.mrf.mxu0
  %v2256 = vadd.f32 0.0, %v2255
  %v2257 = vpop.f32.mrf.mxu0
  %v2258 = vadd.f32 0.0, %v2257
  %2259 = vmatmul.bf16.gmra.mxu0 %v2178
  %v2260 = vpop.f32.mrf.mxu0
  %v2261 = vadd.f32 0.0, %v2260
  %v2262 = vpop.f32.mrf.mxu0
  %v2263 = vadd.f32 0.0, %v2262
  %2264 = vmatmul.bf16.gmra.mxu0 %v2181
  %v2265 = vpop.f32.mrf.mxu0
  %v2266 = vadd.f32 0.0, %v2265
  %v2267 = vpop.f32.mrf.mxu0
  %v2268 = vadd.f32 0.0, %v2267
  %2269 = vmatmul.bf16.gmra.mxu0 %v2184
  %v2270 = vpop.f32.mrf.mxu0
  %v2271 = vadd.f32 0.0, %v2270
  %v2272 = vpop.f32.mrf.mxu0
  %v2273 = vadd.f32 0.0, %v2272
  %2274 = vdwg.mxu0
  %v2275 = vld [vmem:[%s5] sm:$0xf]
  %v2276 = vld [vmem:[%s5 + $0x4] sm:$0x3]
  %v2277 = vpack.c.bf16 %v2198, %v2196
  %v2278 = vpack.c.bf16 %v2203, %v2201
  %v2279 = vpack.c.bf16 %v2208, %v2206
  %v2280 = vpack.c.bf16 %v2213, %v2211
  %v2281 = vpack.c.bf16 %v2218, %v2216
  %v2282 = vpack.c.bf16 %v2223, %v2221
  %v2283 = vpack.c.bf16 %v2228, %v2226
  %v2284 = vpack.c.bf16 %v2233, %v2231
  %v2285 = vpack.c.bf16 %v2238, %v2236
  %v2286 = vpack.c.bf16 %v2243, %v2241
  %v2287 = vpack.c.bf16 %v2248, %v2246
  %v2288 = vpack.c.bf16 %v2253, %v2251
  %v2289 = vpack.c.bf16 %v2258, %v2256
  %v2290 = vpack.c.bf16 %v2263, %v2261
  %v2291 = vpack.c.bf16 %v2268, %v2266
  %v2292 = vpack.c.bf16 %v2273, %v2271
  %v2295 = vunpack.c.l.b16 %v2275
  %v2296 = vunpack.c.l.b16 %v2276
  %v2297 = vpack.c.b16 %v2296, %v2295
  %v2299 = vsel %vm684, %v2297, 0
  %v2302 = vsel %vm684, %v2277, 0
  %v2305 = vsel %vm684, %v2278, 0
  %v2308 = vsel %vm684, %v2279, 0
  %v2311 = vsel %vm684, %v2280, 0
  %v2314 = vsel %vm684, %v2281, 0
  %v2317 = vsel %vm684, %v2282, 0
  %v2320 = vsel %vm684, %v2283, 0
  %v2323 = vsel %vm684, %v2284, 0
  %v2326 = vsel %vm684, %v2285, 0
  %v2329 = vsel %vm684, %v2286, 0
  %v2332 = vsel %vm684, %v2287, 0
  %v2335 = vsel %vm684, %v2288, 0
  %v2338 = vsel %vm684, %v2289, 0
  %v2341 = vsel %vm684, %v2290, 0
  %v2344 = vsel %vm684, %v2291, 0
  %v2347 = vsel %vm684, %v2292, 0
  %2349 = vmatpush.bf16.xpose.msra.mxu0 %v2323
  %2350 = vmatpush.bf16.xpose.msra.mxu0 %v2320
  %2351 = vmatpush.bf16.xpose.msra.mxu0 %v2317
  %2352 = vmatpush.bf16.xpose.msra.mxu0 %v2314
  %2353 = vmatpush.bf16.xpose.msra.mxu0 %v2311
  %2354 = vmatpush.bf16.xpose.msra.mxu0 %v2308
  %2355 = vmatpush.bf16.xpose.msra.mxu0 %v2305
  %2356 = vmatpush.bf16.xpose.msra.mxu0 %v2302
  %2357 = vmatmul.bf16.gmra.mxu0 %v2299
  %v2358 = vpop.f32.mrf.mxu0
  %v2359 = vadd.f32 0.0, %v2358
  %v2360 = vpop.f32.mrf.mxu0
  %v2361 = vadd.f32 0.0, %v2360
  %2362 = vdwg.mxu0
  %2363 = vmatpush.bf16.xpose.msra.mxu0 %v2347
  %2364 = vmatpush.bf16.xpose.msra.mxu0 %v2344
  %2365 = vmatpush.bf16.xpose.msra.mxu0 %v2341
  %2366 = vmatpush.bf16.xpose.msra.mxu0 %v2338
  %2367 = vmatpush.bf16.xpose.msra.mxu0 %v2335
  %2368 = vmatpush.bf16.xpose.msra.mxu0 %v2332
  %2369 = vmatpush.bf16.xpose.msra.mxu0 %v2329
  %2370 = vmatpush.bf16.xpose.msra.mxu0 %v2326
  %2371 = vmatmul.bf16.gmra.mxu0 %v2299
  %v2372 = vpop.f32.mrf.mxu0
  %v2373 = vadd.f32 0.0, %v2372
  %v2374 = vpop.f32.mrf.mxu0
  %v2375 = vadd.f32 0.0, %v2374
  %2376 = vdwg.mxu0
  %v2379 = vunpack.c.l.b16 %v1926
  %v2380 = vunpack.c.l.b16 %v1927
  %v2381 = vpack.c.b16 %v2380, %v2379
  %v2383 = vsel %vm684, %v2381, 0
  %v2386 = vsel %vm684, %v1928, 0
  %v2389 = vsel %vm684, %v1929, 0
  %v2392 = vsel %vm684, %v1930, 0
  %v2395 = vsel %vm684, %v1931, 0
  %v2398 = vsel %vm684, %v1932, 0
  %v2401 = vsel %vm684, %v1933, 0
  %v2404 = vsel %vm684, %v1934, 0
  %v2407 = vsel %vm684, %v1935, 0
  %v2410 = vsel %vm684, %v1936, 0
  %v2413 = vsel %vm684, %v1937, 0
  %v2416 = vsel %vm684, %v1938, 0
  %v2419 = vsel %vm684, %v1939, 0
  %v2422 = vsel %vm684, %v1940, 0
  %v2425 = vsel %vm684, %v1941, 0
  %v2428 = vsel %vm684, %v1942, 0
  %v2431 = vsel %vm684, %v1943, 0
  %2433 = vmatpush.bf16.xpose.msra.mxu0 %v2407
  %2434 = vmatpush.bf16.xpose.msra.mxu0 %v2404
  %2435 = vmatpush.bf16.xpose.msra.mxu0 %v2401
  %2436 = vmatpush.bf16.xpose.msra.mxu0 %v2398
  %2437 = vmatpush.bf16.xpose.msra.mxu0 %v2395
  %2438 = vmatpush.bf16.xpose.msra.mxu0 %v2392
  %2439 = vmatpush.bf16.xpose.msra.mxu0 %v2389
  %2440 = vmatpush.bf16.xpose.msra.mxu0 %v2386
  %2441 = vmatmul.bf16.gmra.mxu0 %v2383
  %v2442 = vpop.f32.mrf.mxu0
  %v2443 = vadd.f32 %v2359, %v2442
  %v2444 = vpop.f32.mrf.mxu0
  %v2445 = vadd.f32 %v2361, %v2444
  %2446 = vdwg.mxu0
  %2447 = vmatpush.bf16.xpose.msra.mxu0 %v2431
  %2448 = vmatpush.bf16.xpose.msra.mxu0 %v2428
  %2449 = vmatpush.bf16.xpose.msra.mxu0 %v2425
  %2450 = vmatpush.bf16.xpose.msra.mxu0 %v2422
  %2451 = vmatpush.bf16.xpose.msra.mxu0 %v2419
  %2452 = vmatpush.bf16.xpose.msra.mxu0 %v2416
  %2453 = vmatpush.bf16.xpose.msra.mxu0 %v2413
  %2454 = vmatpush.bf16.xpose.msra.mxu0 %v2410
  %2455 = vmatmul.bf16.gmra.mxu0 %v2383
  %v2456 = vpop.f32.mrf.mxu0
  %v2457 = vadd.f32 %v2373, %v2456
  %v2458 = vpop.f32.mrf.mxu0
  %v2459 = vadd.f32 %v2375, %v2458
  %2460 = vdwg.mxu0
  %s2461 = scalar_lea.vmem %s7, 8
  %v2462 = vld [vmem:[%s2461] sm:$0xf]
  %v2463 = vld [vmem:[%s2461 + $0x4] sm:$0xf]
  %v2464 = vld [vmem:[%s8] sm:$0xf]
  %v2465 = vld [vmem:[%s8 + $0x4] sm:$0xf]
  %v2466 = vld [vmem:[%s8 + $0x8] sm:$0xf]
  %v2467 = vld [vmem:[%s8 + $0xc] sm:$0xf]
  %v2470 = vunpack.c.l.b16 %v2462
  %v2471 = vunpack.c.l.b16 %v2463
  %v2472 = vpack.c.b16 %v2471, %v2470
  %v2477 = vunpack.c.l.b16 %v2464
  %v2478 = vunpack.c.l.b16 %v2465
  %v2479 = vunpack.c.l.b16 %v2466
  %v2480 = vunpack.c.l.b16 %v2467
  %v2481 = vpack.c.b16 %v2478, %v2477
  %v2482 = vpack.c.b16 %v2480, %v2479
  %v2486 = vsel %vm684, %v2472, 0
  %2488 = vmatpush.bf16.msra.mxu0 0
  %2489 = vmatpush.bf16.msra.mxu0 0
  %2490 = vmatpush.bf16.msra.mxu0 0
  %2491 = vmatpush.bf16.msra.mxu0 0
  %2492 = vmatpush.bf16.msra.mxu0 0
  %2493 = vmatpush.bf16.msra.mxu0 0
  %2494 = vmatpush.bf16.msra.mxu0 %v2482
  %2495 = vmatpush.bf16.msra.mxu0 %v2481
  %2496 = vmatmul.bf16.gmra.mxu0 %v2486
  %v2497 = vpop.f32.mrf.mxu0
  %v2498 = vadd.f32 0.0, %v2497
  %v2499 = vpop.f32.mrf.mxu0
  %v2500 = vadd.f32 0.0, %v2499
  %2501 = vdwg.mxu0
  %v2502 = vld [vmem:[%s10] sm:$0xf]
  %v2503 = vld [vmem:[%s10 + $0x4] sm:$0xf]
  %v2504 = vld [vmem:[%s10 + $0x8] sm:$0xf]
  %v2505 = vld [vmem:[%s10 + $0xc] sm:$0xf]
  %v2506 = vld [vmem:[%s10 + $0x10] sm:$0xf]
  %v2507 = vld [vmem:[%s10 + $0x14] sm:$0xf]
  %v2508 = vld [vmem:[%s10 + $0x18] sm:$0xf]
  %v2509 = vld [vmem:[%s10 + $0x1c] sm:$0xf]
  %v2510 = vld [vmem:[%s10 + $0x20] sm:$0xf]
  %v2511 = vld [vmem:[%s10 + $0x24] sm:$0xf]
  %v2512 = vld [vmem:[%s10 + $0x28] sm:$0xf]
  %v2513 = vld [vmem:[%s10 + $0x2c] sm:$0xf]
  %v2514 = vld [vmem:[%s10 + $0x30] sm:$0xf]
  %v2515 = vld [vmem:[%s10 + $0x34] sm:$0xf]
  %v2516 = vld [vmem:[%s10 + $0x38] sm:$0xf]
  %v2517 = vld [vmem:[%s10 + $0x3c] sm:$0xf]
  %v2518 = vld [vmem:[%s10 + $0x40] sm:$0xf]
  %v2519 = vld [vmem:[%s10 + $0x44] sm:$0xf]
  %v2520 = vld [vmem:[%s10 + $0x48] sm:$0xf]
  %v2521 = vld [vmem:[%s10 + $0x4c] sm:$0xf]
  %v2522 = vld [vmem:[%s10 + $0x50] sm:$0xf]
  %v2523 = vld [vmem:[%s10 + $0x54] sm:$0xf]
  %v2524 = vld [vmem:[%s10 + $0x58] sm:$0xf]
  %v2525 = vld [vmem:[%s10 + $0x5c] sm:$0xf]
  %v2526 = vld [vmem:[%s10 + $0x60] sm:$0xf]
  %v2527 = vld [vmem:[%s10 + $0x64] sm:$0xf]
  %v2528 = vld [vmem:[%s10 + $0x68] sm:$0xf]
  %v2529 = vld [vmem:[%s10 + $0x6c] sm:$0xf]
  %v2530 = vld [vmem:[%s10 + $0x70] sm:$0xf]
  %v2531 = vld [vmem:[%s10 + $0x74] sm:$0xf]
  %v2532 = vld [vmem:[%s10 + $0x78] sm:$0xf]
  %v2533 = vld [vmem:[%s10 + $0x7c] sm:$0xf]
  %v2534 = vpack.c.bf16 %v2500, %v2498
  %v2567 = vunpack.c.l.b16 %v2502
  %v2568 = vunpack.c.l.b16 %v2503
  %v2569 = vunpack.c.l.b16 %v2504
  %v2570 = vunpack.c.l.b16 %v2505
  %v2571 = vunpack.c.l.b16 %v2506
  %v2572 = vunpack.c.l.b16 %v2507
  %v2573 = vunpack.c.l.b16 %v2508
  %v2574 = vunpack.c.l.b16 %v2509
  %v2575 = vunpack.c.l.b16 %v2510
  %v2576 = vunpack.c.l.b16 %v2511
  %v2577 = vunpack.c.l.b16 %v2512
  %v2578 = vunpack.c.l.b16 %v2513
  %v2579 = vunpack.c.l.b16 %v2514
  %v2580 = vunpack.c.l.b16 %v2515
  %v2581 = vunpack.c.l.b16 %v2516
  %v2582 = vunpack.c.l.b16 %v2517
  %v2583 = vunpack.c.l.b16 %v2518
  %v2584 = vunpack.c.l.b16 %v2519
  %v2585 = vunpack.c.l.b16 %v2520
  %v2586 = vunpack.c.l.b16 %v2521
  %v2587 = vunpack.c.l.b16 %v2522
  %v2588 = vunpack.c.l.b16 %v2523
  %v2589 = vunpack.c.l.b16 %v2524
  %v2590 = vunpack.c.l.b16 %v2525
  %v2591 = vunpack.c.l.b16 %v2526
  %v2592 = vunpack.c.l.b16 %v2527
  %v2593 = vunpack.c.l.b16 %v2528
  %v2594 = vunpack.c.l.b16 %v2529
  %v2595 = vunpack.c.l.b16 %v2530
  %v2596 = vunpack.c.l.b16 %v2531
  %v2597 = vunpack.c.l.b16 %v2532
  %v2598 = vunpack.c.l.b16 %v2533
  %v2599 = vpack.c.b16 %v2568, %v2567
  %v2600 = vpack.c.b16 %v2570, %v2569
  %v2601 = vpack.c.b16 %v2572, %v2571
  %v2602 = vpack.c.b16 %v2574, %v2573
  %v2603 = vpack.c.b16 %v2576, %v2575
  %v2604 = vpack.c.b16 %v2578, %v2577
  %v2605 = vpack.c.b16 %v2580, %v2579
  %v2606 = vpack.c.b16 %v2582, %v2581
  %v2607 = vpack.c.b16 %v2584, %v2583
  %v2608 = vpack.c.b16 %v2586, %v2585
  %v2609 = vpack.c.b16 %v2588, %v2587
  %v2610 = vpack.c.b16 %v2590, %v2589
  %v2611 = vpack.c.b16 %v2592, %v2591
  %v2612 = vpack.c.b16 %v2594, %v2593
  %v2613 = vpack.c.b16 %v2596, %v2595
  %v2614 = vpack.c.b16 %v2598, %v2597
  %v2616 = vsel %vm365, %v2599, 0
  %v2619 = vsel %vm365, %v2600, 0
  %v2622 = vsel %vm365, %v2601, 0
  %v2625 = vsel %vm365, %v2602, 0
  %v2628 = vsel %vm365, %v2603, 0
  %v2631 = vsel %vm365, %v2604, 0
  %v2634 = vsel %vm365, %v2605, 0
  %v2637 = vsel %vm365, %v2606, 0
  %v2640 = vsel %vm365, %v2607, 0
  %v2643 = vsel %vm365, %v2608, 0
  %v2646 = vsel %vm365, %v2609, 0
  %v2649 = vsel %vm365, %v2610, 0
  %v2652 = vsel %vm365, %v2611, 0
  %v2655 = vsel %vm365, %v2612, 0
  %v2658 = vsel %vm365, %v2613, 0
  %v2661 = vsel %vm365, %v2614, 0
  %2663 = vmatpush.bf16.msra.mxu0 0
  %2664 = vmatpush.bf16.msra.mxu0 0
  %2665 = vmatpush.bf16.msra.mxu0 0
  %2666 = vmatpush.bf16.msra.mxu0 0
  %2667 = vmatpush.bf16.msra.mxu0 0
  %2668 = vmatpush.bf16.msra.mxu0 0
  %2669 = vmatpush.bf16.msra.mxu0 0
  %2670 = vmatpush.bf16.msra.mxu0 %v2534
  %2671 = vmatmul.bf16.gmra.mxu0 %v2616
  %v2672 = vpop.f32.mrf.mxu0
  %v2673 = vadd.f32 0.0, %v2672
  %v2674 = vpop.f32.mrf.mxu0
  %v2675 = vadd.f32 0.0, %v2674
  %2676 = vmatmul.bf16.gmra.mxu0 %v2619
  %v2677 = vpop.f32.mrf.mxu0
  %v2678 = vadd.f32 0.0, %v2677
  %v2679 = vpop.f32.mrf.mxu0
  %v2680 = vadd.f32 0.0, %v2679
  %2681 = vmatmul.bf16.gmra.mxu0 %v2622
  %v2682 = vpop.f32.mrf.mxu0
  %v2683 = vadd.f32 0.0, %v2682
  %v2684 = vpop.f32.mrf.mxu0
  %v2685 = vadd.f32 0.0, %v2684
  %2686 = vmatmul.bf16.gmra.mxu0 %v2625
  %v2687 = vpop.f32.mrf.mxu0
  %v2688 = vadd.f32 0.0, %v2687
  %v2689 = vpop.f32.mrf.mxu0
  %v2690 = vadd.f32 0.0, %v2689
  %2691 = vmatmul.bf16.gmra.mxu0 %v2628
  %v2692 = vpop.f32.mrf.mxu0
  %v2693 = vadd.f32 0.0, %v2692
  %v2694 = vpop.f32.mrf.mxu0
  %v2695 = vadd.f32 0.0, %v2694
  %2696 = vmatmul.bf16.gmra.mxu0 %v2631
  %v2697 = vpop.f32.mrf.mxu0
  %v2698 = vadd.f32 0.0, %v2697
  %v2699 = vpop.f32.mrf.mxu0
  %v2700 = vadd.f32 0.0, %v2699
  %2701 = vmatmul.bf16.gmra.mxu0 %v2634
  %v2702 = vpop.f32.mrf.mxu0
  %v2703 = vadd.f32 0.0, %v2702
  %v2704 = vpop.f32.mrf.mxu0
  %v2705 = vadd.f32 0.0, %v2704
  %2706 = vmatmul.bf16.gmra.mxu0 %v2637
  %v2707 = vpop.f32.mrf.mxu0
  %v2708 = vadd.f32 0.0, %v2707
  %v2709 = vpop.f32.mrf.mxu0
  %v2710 = vadd.f32 0.0, %v2709
  %2711 = vmatmul.bf16.gmra.mxu0 %v2640
  %v2712 = vpop.f32.mrf.mxu0
  %v2713 = vadd.f32 0.0, %v2712
  %v2714 = vpop.f32.mrf.mxu0
  %v2715 = vadd.f32 0.0, %v2714
  %2716 = vmatmul.bf16.gmra.mxu0 %v2643
  %v2717 = vpop.f32.mrf.mxu0
  %v2718 = vadd.f32 0.0, %v2717
  %v2719 = vpop.f32.mrf.mxu0
  %v2720 = vadd.f32 0.0, %v2719
  %2721 = vmatmul.bf16.gmra.mxu0 %v2646
  %v2722 = vpop.f32.mrf.mxu0
  %v2723 = vadd.f32 0.0, %v2722
  %v2724 = vpop.f32.mrf.mxu0
  %v2725 = vadd.f32 0.0, %v2724
  %2726 = vmatmul.bf16.gmra.mxu0 %v2649
  %v2727 = vpop.f32.mrf.mxu0
  %v2728 = vadd.f32 0.0, %v2727
  %v2729 = vpop.f32.mrf.mxu0
  %v2730 = vadd.f32 0.0, %v2729
  %2731 = vmatmul.bf16.gmra.mxu0 %v2652
  %v2732 = vpop.f32.mrf.mxu0
  %v2733 = vadd.f32 0.0, %v2732
  %v2734 = vpop.f32.mrf.mxu0
  %v2735 = vadd.f32 0.0, %v2734
  %2736 = vmatmul.bf16.gmra.mxu0 %v2655
  %v2737 = vpop.f32.mrf.mxu0
  %v2738 = vadd.f32 0.0, %v2737
  %v2739 = vpop.f32.mrf.mxu0
  %v2740 = vadd.f32 0.0, %v2739
  %2741 = vmatmul.bf16.gmra.mxu0 %v2658
  %v2742 = vpop.f32.mrf.mxu0
  %v2743 = vadd.f32 0.0, %v2742
  %v2744 = vpop.f32.mrf.mxu0
  %v2745 = vadd.f32 0.0, %v2744
  %2746 = vmatmul.bf16.gmra.mxu0 %v2661
  %v2747 = vpop.f32.mrf.mxu0
  %v2748 = vadd.f32 0.0, %v2747
  %v2749 = vpop.f32.mrf.mxu0
  %v2750 = vadd.f32 0.0, %v2749
  %2751 = vdwg.mxu0
  %v2752 = vld [vmem:[%s9] sm:$0xf]
  %v2753 = vld [vmem:[%s9 + $0x4] sm:$0x3]
  %v2754 = vpack.c.bf16 %v2675, %v2673
  %v2755 = vpack.c.bf16 %v2680, %v2678
  %v2756 = vpack.c.bf16 %v2685, %v2683
  %v2757 = vpack.c.bf16 %v2690, %v2688
  %v2758 = vpack.c.bf16 %v2695, %v2693
  %v2759 = vpack.c.bf16 %v2700, %v2698
  %v2760 = vpack.c.bf16 %v2705, %v2703
  %v2761 = vpack.c.bf16 %v2710, %v2708
  %v2762 = vpack.c.bf16 %v2715, %v2713
  %v2763 = vpack.c.bf16 %v2720, %v2718
  %v2764 = vpack.c.bf16 %v2725, %v2723
  %v2765 = vpack.c.bf16 %v2730, %v2728
  %v2766 = vpack.c.bf16 %v2735, %v2733
  %v2767 = vpack.c.bf16 %v2740, %v2738
  %v2768 = vpack.c.bf16 %v2745, %v2743
  %v2769 = vpack.c.bf16 %v2750, %v2748
  %v2772 = vunpack.c.l.b16 %v2752
  %v2773 = vunpack.c.l.b16 %v2753
  %v2774 = vpack.c.b16 %v2773, %v2772
  %v2776 = vsel %vm684, %v2774, 0
  %v2779 = vsel %vm684, %v2754, 0
  %v2782 = vsel %vm684, %v2755, 0
  %v2785 = vsel %vm684, %v2756, 0
  %v2788 = vsel %vm684, %v2757, 0
  %v2791 = vsel %vm684, %v2758, 0
  %v2794 = vsel %vm684, %v2759, 0
  %v2797 = vsel %vm684, %v2760, 0
  %v2800 = vsel %vm684, %v2761, 0
  %v2803 = vsel %vm684, %v2762, 0
  %v2806 = vsel %vm684, %v2763, 0
  %v2809 = vsel %vm684, %v2764, 0
  %v2812 = vsel %vm684, %v2765, 0
  %v2815 = vsel %vm684, %v2766, 0
  %v2818 = vsel %vm684, %v2767, 0
  %v2821 = vsel %vm684, %v2768, 0
  %v2824 = vsel %vm684, %v2769, 0
  %2826 = vmatpush.bf16.xpose.msra.mxu0 %v2800
  %2827 = vmatpush.bf16.xpose.msra.mxu0 %v2797
  %2828 = vmatpush.bf16.xpose.msra.mxu0 %v2794
  %2829 = vmatpush.bf16.xpose.msra.mxu0 %v2791
  %2830 = vmatpush.bf16.xpose.msra.mxu0 %v2788
  %2831 = vmatpush.bf16.xpose.msra.mxu0 %v2785
  %2832 = vmatpush.bf16.xpose.msra.mxu0 %v2782
  %2833 = vmatpush.bf16.xpose.msra.mxu0 %v2779
  %2834 = vmatmul.bf16.gmra.mxu0 %v2776
  %v2835 = vpop.f32.mrf.mxu0
  %v2836 = vadd.f32 0.0, %v2835
  %v2837 = vpop.f32.mrf.mxu0
  %v2838 = vadd.f32 0.0, %v2837
  %2839 = vdwg.mxu0
  %2840 = vmatpush.bf16.xpose.msra.mxu0 %v2824
  %2841 = vmatpush.bf16.xpose.msra.mxu0 %v2821
  %2842 = vmatpush.bf16.xpose.msra.mxu0 %v2818
  %2843 = vmatpush.bf16.xpose.msra.mxu0 %v2815
  %2844 = vmatpush.bf16.xpose.msra.mxu0 %v2812
  %2845 = vmatpush.bf16.xpose.msra.mxu0 %v2809
  %2846 = vmatpush.bf16.xpose.msra.mxu0 %v2806
  %2847 = vmatpush.bf16.xpose.msra.mxu0 %v2803
  %2848 = vmatmul.bf16.gmra.mxu0 %v2776
  %v2849 = vpop.f32.mrf.mxu0
  %v2850 = vadd.f32 0.0, %v2849
  %v2851 = vpop.f32.mrf.mxu0
  %v2852 = vadd.f32 0.0, %v2851
  %2853 = vdwg.mxu0
  %v2854 = vadd.f32 %v2443, %v2836
  %v2855 = vadd.f32 %v2457, %v2850
  %v2856 = vadd.f32 %v2445, %v2838
  %v2857 = vadd.f32 %v2459, %v2852
  %s2858 = scalar_lea.vmem %s11, 2
  %v2859 = vld [vmem:[%s2858] sm:$0x3]
  %v2860 = vld [vmem:[%s12] sm:$0xf]
  %v2861 = vld [vmem:[%s12 + $0x4] sm:$0xf]
  %v2862 = vld [vmem:[%s12 + $0x8] sm:$0xf]
  %v2863 = vld [vmem:[%s12 + $0xc] sm:$0xf]
  %v2864 = vld [vmem:[%s12 + $0x10] sm:$0xf]
  %v2865 = vld [vmem:[%s12 + $0x14] sm:$0xf]
  %v2866 = vld [vmem:[%s12 + $0x18] sm:$0xf]
  %v2867 = vld [vmem:[%s12 + $0x1c] sm:$0xf]
  %v2876 = vunpack.c.l.b16 %v2860
  %v2877 = vunpack.c.l.b16 %v2861
  %v2878 = vunpack.c.l.b16 %v2862
  %v2879 = vunpack.c.l.b16 %v2863
  %v2880 = vunpack.c.l.b16 %v2864
  %v2881 = vunpack.c.l.b16 %v2865
  %v2882 = vunpack.c.l.b16 %v2866
  %v2883 = vunpack.c.l.b16 %v2867
  %v2884 = vpack.c.b16 %v2877, %v2876
  %v2885 = vpack.c.b16 %v2879, %v2878
  %v2886 = vpack.c.b16 %v2881, %v2880
  %v2887 = vpack.c.b16 %v2883, %v2882
  %v2893 = vsel %vm523, %v2859, 0
  %2895 = vmatpush.bf16.msra.mxu0 0
  %2896 = vmatpush.bf16.msra.mxu0 0
  %2897 = vmatpush.bf16.msra.mxu0 0
  %2898 = vmatpush.bf16.msra.mxu0 0
  %2899 = vmatpush.bf16.msra.mxu0 %v2887
  %2900 = vmatpush.bf16.msra.mxu0 %v2886
  %2901 = vmatpush.bf16.msra.mxu0 %v2885
  %2902 = vmatpush.bf16.msra.mxu0 %v2884
  %2903 = vmatmul.bf16.gmra.mxu0 %v2893
  %v2904 = vpop.f32.mrf.mxu0
  %v2905 = vadd.f32 0.0, %v2904
  %v2906 = vpop.f32.mrf.mxu0
  %2907 = vdwg.mxu0
  %v2908 = vld [vmem:[%s14] sm:$0xf]
  %v2909 = vld [vmem:[%s14 + $0x4] sm:$0xf]
  %v2910 = vld [vmem:[%s14 + $0x8] sm:$0xf]
  %v2911 = vld [vmem:[%s14 + $0xc] sm:$0xf]
  %v2912 = vld [vmem:[%s14 + $0x10] sm:$0xf]
  %v2913 = vld [vmem:[%s14 + $0x14] sm:$0xf]
  %v2914 = vld [vmem:[%s14 + $0x18] sm:$0xf]
  %v2915 = vld [vmem:[%s14 + $0x1c] sm:$0xf]
  %v2916 = vld [vmem:[%s14 + $0x20] sm:$0xf]
  %v2917 = vld [vmem:[%s14 + $0x24] sm:$0xf]
  %v2918 = vld [vmem:[%s14 + $0x28] sm:$0xf]
  %v2919 = vld [vmem:[%s14 + $0x2c] sm:$0xf]
  %v2920 = vld [vmem:[%s14 + $0x30] sm:$0xf]
  %v2921 = vld [vmem:[%s14 + $0x34] sm:$0xf]
  %v2922 = vld [vmem:[%s14 + $0x38] sm:$0xf]
  %v2923 = vld [vmem:[%s14 + $0x3c] sm:$0xf]
  %v2924 = vld [vmem:[%s14 + $0x40] sm:$0xf]
  %v2925 = vld [vmem:[%s14 + $0x44] sm:$0xf]
  %v2926 = vld [vmem:[%s14 + $0x48] sm:$0xf]
  %v2927 = vld [vmem:[%s14 + $0x4c] sm:$0xf]
  %v2928 = vld [vmem:[%s14 + $0x50] sm:$0xf]
  %v2929 = vld [vmem:[%s14 + $0x54] sm:$0xf]
  %v2930 = vld [vmem:[%s14 + $0x58] sm:$0xf]
  %v2931 = vld [vmem:[%s14 + $0x5c] sm:$0xf]
  %v2932 = vld [vmem:[%s14 + $0x60] sm:$0xf]
  %v2933 = vld [vmem:[%s14 + $0x64] sm:$0xf]
  %v2934 = vld [vmem:[%s14 + $0x68] sm:$0xf]
  %v2935 = vld [vmem:[%s14 + $0x6c] sm:$0xf]
  %v2936 = vld [vmem:[%s14 + $0x70] sm:$0xf]
  %v2937 = vld [vmem:[%s14 + $0x74] sm:$0xf]
  %v2938 = vld [vmem:[%s14 + $0x78] sm:$0xf]
  %v2939 = vld [vmem:[%s14 + $0x7c] sm:$0xf]
  %v2940 = vpack.c.bf16 %v2905, %v2905
  %v2973 = vunpack.c.l.b16 %v2908
  %v2974 = vunpack.c.l.b16 %v2909
  %v2975 = vunpack.c.l.b16 %v2910
  %v2976 = vunpack.c.l.b16 %v2911
  %v2977 = vunpack.c.l.b16 %v2912
  %v2978 = vunpack.c.l.b16 %v2913
  %v2979 = vunpack.c.l.b16 %v2914
  %v2980 = vunpack.c.l.b16 %v2915
  %v2981 = vunpack.c.l.b16 %v2916
  %v2982 = vunpack.c.l.b16 %v2917
  %v2983 = vunpack.c.l.b16 %v2918
  %v2984 = vunpack.c.l.b16 %v2919
  %v2985 = vunpack.c.l.b16 %v2920
  %v2986 = vunpack.c.l.b16 %v2921
  %v2987 = vunpack.c.l.b16 %v2922
  %v2988 = vunpack.c.l.b16 %v2923
  %v2989 = vunpack.c.l.b16 %v2924
  %v2990 = vunpack.c.l.b16 %v2925
  %v2991 = vunpack.c.l.b16 %v2926
  %v2992 = vunpack.c.l.b16 %v2927
  %v2993 = vunpack.c.l.b16 %v2928
  %v2994 = vunpack.c.l.b16 %v2929
  %v2995 = vunpack.c.l.b16 %v2930
  %v2996 = vunpack.c.l.b16 %v2931
  %v2997 = vunpack.c.l.b16 %v2932
  %v2998 = vunpack.c.l.b16 %v2933
  %v2999 = vunpack.c.l.b16 %v2934
  %v3000 = vunpack.c.l.b16 %v2935
  %v3001 = vunpack.c.l.b16 %v2936
  %v3002 = vunpack.c.l.b16 %v2937
  %v3003 = vunpack.c.l.b16 %v2938
  %v3004 = vunpack.c.l.b16 %v2939
  %v3005 = vpack.c.b16 %v2974, %v2973
  %v3006 = vpack.c.b16 %v2976, %v2975
  %v3007 = vpack.c.b16 %v2978, %v2977
  %v3008 = vpack.c.b16 %v2980, %v2979
  %v3009 = vpack.c.b16 %v2982, %v2981
  %v3010 = vpack.c.b16 %v2984, %v2983
  %v3011 = vpack.c.b16 %v2986, %v2985
  %v3012 = vpack.c.b16 %v2988, %v2987
  %v3013 = vpack.c.b16 %v2990, %v2989
  %v3014 = vpack.c.b16 %v2992, %v2991
  %v3015 = vpack.c.b16 %v2994, %v2993
  %v3016 = vpack.c.b16 %v2996, %v2995
  %v3017 = vpack.c.b16 %v2998, %v2997
  %v3018 = vpack.c.b16 %v3000, %v2999
  %v3019 = vpack.c.b16 %v3002, %v3001
  %v3020 = vpack.c.b16 %v3004, %v3003
  %v3022 = vsel %vm1406, %v3005, 0
  %v3025 = vsel %vm1406, %v3006, 0
  %v3028 = vsel %vm1406, %v3007, 0
  %v3031 = vsel %vm1406, %v3008, 0
  %v3034 = vsel %vm1406, %v3009, 0
  %v3037 = vsel %vm1406, %v3010, 0
  %v3040 = vsel %vm1406, %v3011, 0
  %v3043 = vsel %vm1406, %v3012, 0
  %v3046 = vsel %vm1406, %v3013, 0
  %v3049 = vsel %vm1406, %v3014, 0
  %v3052 = vsel %vm1406, %v3015, 0
  %v3055 = vsel %vm1406, %v3016, 0
  %v3058 = vsel %vm1406, %v3017, 0
  %v3061 = vsel %vm1406, %v3018, 0
  %v3064 = vsel %vm1406, %v3019, 0
  %v3067 = vsel %vm1406, %v3020, 0
  %v3070 = vsel %vm1455, %v2940, 0
  %3072 = vmatpush.bf16.msra.mxu0 0
  %3073 = vmatpush.bf16.msra.mxu0 0
  %3074 = vmatpush.bf16.msra.mxu0 0
  %3075 = vmatpush.bf16.msra.mxu0 0
  %3076 = vmatpush.bf16.msra.mxu0 0
  %3077 = vmatpush.bf16.msra.mxu0 0
  %3078 = vmatpush.bf16.msra.mxu0 0
  %3079 = vmatpush.bf16.msra.mxu0 %v3070
  %3080 = vmatmul.bf16.gmra.mxu0 %v3022
  %v3081 = vpop.f32.mrf.mxu0
  %v3082 = vadd.f32 0.0, %v3081
  %v3083 = vpop.f32.mrf.mxu0
  %v3084 = vadd.f32 0.0, %v3083
  %3085 = vmatmul.bf16.gmra.mxu0 %v3025
  %v3086 = vpop.f32.mrf.mxu0
  %v3087 = vadd.f32 0.0, %v3086
  %v3088 = vpop.f32.mrf.mxu0
  %v3089 = vadd.f32 0.0, %v3088
  %3090 = vmatmul.bf16.gmra.mxu0 %v3028
  %v3091 = vpop.f32.mrf.mxu0
  %v3092 = vadd.f32 0.0, %v3091
  %v3093 = vpop.f32.mrf.mxu0
  %v3094 = vadd.f32 0.0, %v3093
  %3095 = vmatmul.bf16.gmra.mxu0 %v3031
  %v3096 = vpop.f32.mrf.mxu0
  %v3097 = vadd.f32 0.0, %v3096
  %v3098 = vpop.f32.mrf.mxu0
  %v3099 = vadd.f32 0.0, %v3098
  %3100 = vmatmul.bf16.gmra.mxu0 %v3034
  %v3101 = vpop.f32.mrf.mxu0
  %v3102 = vadd.f32 0.0, %v3101
  %v3103 = vpop.f32.mrf.mxu0
  %v3104 = vadd.f32 0.0, %v3103
  %3105 = vmatmul.bf16.gmra.mxu0 %v3037
  %v3106 = vpop.f32.mrf.mxu0
  %v3107 = vadd.f32 0.0, %v3106
  %v3108 = vpop.f32.mrf.mxu0
  %v3109 = vadd.f32 0.0, %v3108
  %3110 = vmatmul.bf16.gmra.mxu0 %v3040
  %v3111 = vpop.f32.mrf.mxu0
  %v3112 = vadd.f32 0.0, %v3111
  %v3113 = vpop.f32.mrf.mxu0
  %v3114 = vadd.f32 0.0, %v3113
  %3115 = vmatmul.bf16.gmra.mxu0 %v3043
  %v3116 = vpop.f32.mrf.mxu0
  %v3117 = vadd.f32 0.0, %v3116
  %v3118 = vpop.f32.mrf.mxu0
  %v3119 = vadd.f32 0.0, %v3118
  %3120 = vmatmul.bf16.gmra.mxu0 %v3046
  %v3121 = vpop.f32.mrf.mxu0
  %v3122 = vadd.f32 0.0, %v3121
  %v3123 = vpop.f32.mrf.mxu0
  %v3124 = vadd.f32 0.0, %v3123
  %3125 = vmatmul.bf16.gmra.mxu0 %v3049
  %v3126 = vpop.f32.mrf.mxu0
  %v3127 = vadd.f32 0.0, %v3126
  %v3128 = vpop.f32.mrf.mxu0
  %v3129 = vadd.f32 0.0, %v3128
  %3130 = vmatmul.bf16.gmra.mxu0 %v3052
  %v3131 = vpop.f32.mrf.mxu0
  %v3132 = vadd.f32 0.0, %v3131
  %v3133 = vpop.f32.mrf.mxu0
  %v3134 = vadd.f32 0.0, %v3133
  %3135 = vmatmul.bf16.gmra.mxu0 %v3055
  %v3136 = vpop.f32.mrf.mxu0
  %v3137 = vadd.f32 0.0, %v3136
  %v3138 = vpop.f32.mrf.mxu0
  %v3139 = vadd.f32 0.0, %v3138
  %3140 = vmatmul.bf16.gmra.mxu0 %v3058
  %v3141 = vpop.f32.mrf.mxu0
  %v3142 = vadd.f32 0.0, %v3141
  %v3143 = vpop.f32.mrf.mxu0
  %v3144 = vadd.f32 0.0, %v3143
  %3145 = vmatmul.bf16.gmra.mxu0 %v3061
  %v3146 = vpop.f32.mrf.mxu0
  %v3147 = vadd.f32 0.0, %v3146
  %v3148 = vpop.f32.mrf.mxu0
  %v3149 = vadd.f32 0.0, %v3148
  %3150 = vmatmul.bf16.gmra.mxu0 %v3064
  %v3151 = vpop.f32.mrf.mxu0
  %v3152 = vadd.f32 0.0, %v3151
  %v3153 = vpop.f32.mrf.mxu0
  %v3154 = vadd.f32 0.0, %v3153
  %3155 = vmatmul.bf16.gmra.mxu0 %v3067
  %v3156 = vpop.f32.mrf.mxu0
  %v3157 = vadd.f32 0.0, %v3156
  %v3158 = vpop.f32.mrf.mxu0
  %v3159 = vadd.f32 0.0, %v3158
  %3160 = vdwg.mxu0
  %v3161 = vld [vmem:[%s13] sm:$0xf]
  %v3162 = vld [vmem:[%s13 + $0x4] sm:$0x3]
  %v3163 = vpack.c.bf16 %v3084, %v3082
  %v3164 = vpack.c.bf16 %v3089, %v3087
  %v3165 = vpack.c.bf16 %v3094, %v3092
  %v3166 = vpack.c.bf16 %v3099, %v3097
  %v3167 = vpack.c.bf16 %v3104, %v3102
  %v3168 = vpack.c.bf16 %v3109, %v3107
  %v3169 = vpack.c.bf16 %v3114, %v3112
  %v3170 = vpack.c.bf16 %v3119, %v3117
  %v3171 = vpack.c.bf16 %v3124, %v3122
  %v3172 = vpack.c.bf16 %v3129, %v3127
  %v3173 = vpack.c.bf16 %v3134, %v3132
  %v3174 = vpack.c.bf16 %v3139, %v3137
  %v3175 = vpack.c.bf16 %v3144, %v3142
  %v3176 = vpack.c.bf16 %v3149, %v3147
  %v3177 = vpack.c.bf16 %v3154, %v3152
  %v3178 = vpack.c.bf16 %v3159, %v3157
  %v3181 = vunpack.c.l.b16 %v3161
  %v3182 = vunpack.c.l.b16 %v3162
  %v3183 = vpack.c.b16 %v3182, %v3181
  %v3185 = vsel %vm684, %v3183, 0
  %v3188 = vsel %vm684, %v3163, 0
  %v3191 = vsel %vm684, %v3164, 0
  %v3194 = vsel %vm684, %v3165, 0
  %v3197 = vsel %vm684, %v3166, 0
  %v3200 = vsel %vm684, %v3167, 0
  %v3203 = vsel %vm684, %v3168, 0
  %v3206 = vsel %vm684, %v3169, 0
  %v3209 = vsel %vm684, %v3170, 0
  %v3212 = vsel %vm684, %v3171, 0
  %v3215 = vsel %vm684, %v3172, 0
  %v3218 = vsel %vm684, %v3173, 0
  %v3221 = vsel %vm684, %v3174, 0
  %v3224 = vsel %vm684, %v3175, 0
  %v3227 = vsel %vm684, %v3176, 0
  %v3230 = vsel %vm684, %v3177, 0
  %v3233 = vsel %vm684, %v3178, 0
  %3235 = vmatpush.bf16.xpose.msra.mxu0 %v3209
  %3236 = vmatpush.bf16.xpose.msra.mxu0 %v3206
  %3237 = vmatpush.bf16.xpose.msra.mxu0 %v3203
  %3238 = vmatpush.bf16.xpose.msra.mxu0 %v3200
  %3239 = vmatpush.bf16.xpose.msra.mxu0 %v3197
  %3240 = vmatpush.bf16.xpose.msra.mxu0 %v3194
  %3241 = vmatpush.bf16.xpose.msra.mxu0 %v3191
  %3242 = vmatpush.bf16.xpose.msra.mxu0 %v3188
  %3243 = vmatmul.bf16.gmra.mxu0 %v3185
  %v3244 = vpop.f32.mrf.mxu0
  %v3245 = vadd.f32 0.0, %v3244
  %v3246 = vpop.f32.mrf.mxu0
  %v3247 = vadd.f32 0.0, %v3246
  %3248 = vdwg.mxu0
  %3249 = vmatpush.bf16.xpose.msra.mxu0 %v3233
  %3250 = vmatpush.bf16.xpose.msra.mxu0 %v3230
  %3251 = vmatpush.bf16.xpose.msra.mxu0 %v3227
  %3252 = vmatpush.bf16.xpose.msra.mxu0 %v3224
  %3253 = vmatpush.bf16.xpose.msra.mxu0 %v3221
  %3254 = vmatpush.bf16.xpose.msra.mxu0 %v3218
  %3255 = vmatpush.bf16.xpose.msra.mxu0 %v3215
  %3256 = vmatpush.bf16.xpose.msra.mxu0 %v3212
  %3257 = vmatmul.bf16.gmra.mxu0 %v3185
  %v3258 = vpop.f32.mrf.mxu0
  %v3259 = vadd.f32 0.0, %v3258
  %v3260 = vpop.f32.mrf.mxu0
  %v3261 = vadd.f32 0.0, %v3260
  %3262 = vdwg.mxu0
  %v3263 = vadd.f32 %v2854, %v3245
  %v3264 = vadd.f32 %v2855, %v3259
  %v3265 = vadd.f32 %v2856, %v3247
  %v3266 = vadd.f32 %v2857, %v3261
  %v3267 = vadd.f32 %v3263, %v1657
  %v3268 = vadd.f32 %v3264, %v1657
  %v3269 = vadd.f32 %v3265, %v1662
  %v3270 = vadd.f32 %v3266, %v1662
  %s3271 = scalar_lea.vmem %s16, 32
  %3272 = vst [vmem:[%s3271] sm:$0xff] %v3267
  %3273 = vst [vmem:[%s3271 + $0x8] sm:$0xff] %v3268
  %3274 = vst [vmem:[%s3271 + $0x10] sm:$0xf] %v3269
  %3275 = vst [vmem:[%s3271 + $0x18] sm:$0xf] %v3270
  // Predicated region
  $region66: #{tpu_custom_call.1} parent=0 // pred_check
    _
  $region67: #{tpu_custom_call.1} parent=0 // pred_check_branch
    %3277 = sbr.rel (0) target = $region69
  $region68: #{tpu_custom_call.1} parent=0 // pred_region
    _
  $region69: #{tpu_custom_call.1} parent=0 // pred_fallthru
    _
  // Predicated region
  $region70: #{tpu_custom_call.1} parent=0 // pred_check
    _
  $region71: #{tpu_custom_call.1} parent=0 // pred_check_branch
    %3279 = sbr.rel (0) target = $region73
  $region72: #{tpu_custom_call.1} parent=0 // pred_region
    _
  $region73: #{tpu_custom_call.1} parent=0 // pred_fallthru
    _

</llo_original>
